<compile_context>
chip_gen: v7x
topology: tpu7x:2x2x1
jax: 0.10.0
libtpu: 0.0.40
codegen_flags: <defaults>
</compile_context>

<pallas_src>
import jax
import jax.numpy as jnp
from jax.experimental import pallas as pl
from jax.experimental.pallas import tpu as pltpu


def _round_up(x: int, m: int) -> int:
    return ((x + m - 1) // m) * m


def _pairwise_fma_kernel(same_ref, base_ref, delta_ref, out_ref):
    """out[p, :] = base[:] + same[p] * delta[:]   (pure VPU broadcast FMA).

    same_ref : (TILE_P, 1) int8  -- 1 iff the two words share a speaker
    base_ref : (1, 3E)     f32   -- [speaker_emb[0] | distance_row | genre_row]
    delta_ref: (1, 3E)     f32   -- [speaker_emb[1]-speaker_emb[0] | 0 | 0]
    out_ref  : (TILE_P, 3E) f32  -- concatenated pairwise features
    """
    tp, feat = out_ref.shape
    same_f = jnp.broadcast_to(same_ref[...].astype(jnp.float32), (tp, feat))  # lane bcast
    base = jnp.broadcast_to(base_ref[...], (tp, feat))                        # sublane bcast
    delta = jnp.broadcast_to(delta_ref[...], (tp, feat))
    out_ref[...] = base + same_f * delta


def pairwise_encoder_forward(link_pairs, speaker_map, genre_id, params,
                             *, tile_p_max=16384, min_pallas_pairs=4096):
    """Pallas-backed PairwiseEncoder.forward.

    link_pairs : (pair_num, 2) int32 word indices
    speaker_map: (n_words,)   int32 speaker id per word
    genre_id   : int           genre2int[doc['document_id'][:2]]
    params     : (speaker_emb(2,E), distance_emb(9,E), genre_emb(7,E)) float32
    returns    : (pair_num, 3*E) float32
    """
    spk_emb, dist_emb, gen_emb = params
    emb_size = spk_emb.shape[1]
    feat = 3 * emb_size
    pair_num = int(link_pairs.shape[0])

    # ---- index computation (XLA glue, mirrors the PyTorch forward) ----
    pair_spk = speaker_map[link_pairs]                                    # (P, 2)
    same_speaker = (pair_spk[:, 0] == pair_spk[:, 1]).astype(jnp.int8)    # (P,)

    # NOTE: the PyTorch module derives the distance from link_pairs[0] only and repeats it.
    distance = (link_pairs[0, 1] - link_pairs[0, 0]).astype(jnp.int32)
    safe_d = jnp.maximum(distance, 1)                                     # guard log2(<=0)
    log_distance = jnp.minimum(
        jnp.floor(jnp.log2(safe_d.astype(jnp.float32))), 6.0).astype(jnp.int32)
    dist_bucket = jnp.where(distance < 5, distance - 1, log_distance + 2)
    # Degenerate distance <= 0 would crash torch.nn.Embedding; clamp to stay in-table.
    dist_bucket = jnp.clip(dist_bucket, 0, dist_emb.shape[0] - 1)

    dist_row = dist_emb[dist_bucket]                                      # (E,)
    gen_row = gen_emb[genre_id]                                           # (E,)
    row_diff = jnp.concatenate([spk_emb[0], dist_row, gen_row])           # same_speaker == 0
    row_same = jnp.concatenate([spk_emb[1], dist_row, gen_row])           # same_speaker == 1
    base = row_diff[None, :]                                              # (1, 3E)
    delta = (row_same - row_diff)[None, :]                                # (1, 3E)

    # ---- small-P fallback: pallas_call dispatch + pipeline prologue would dominate ----
    if pair_num < min_pallas_pairs:
        out = base + same_speaker.astype(jnp.float32)[:, None] * delta
        # TODO(synk): dropout is treated as eval-mode identity (no RNG mask applied).
        return out

    # ---- tiling over the pair dimension ----
    # Cap tile_p at ~P/4 so the "parallel" pair axis keeps >=4 grid steps (v7x megacore);
    # round to a multiple of 256 rows for clean (8,128) sublane layout.
    tile_p = max(256, min(tile_p_max, _round_up(pl.cdiv(pair_num, 4), 256)))
    grid = (pl.cdiv(pair_num, tile_p),)
    p_pad = grid[0] * tile_p

    # Only the tiny int8 mask column is padded; the output keeps its exact shape and
    # Pallas masks the ragged last output block (no post-kernel slice copy).
    same_col = jnp.zeros((p_pad, 1), jnp.int8).at[:pair_num, 0].set(same_speaker)

    out = pl.pallas_call(
        _pairwise_fma_kernel,
        out_shape=jax.ShapeDtypeStruct((pair_num, feat), jnp.float32),
        grid_spec=pltpu.PrefetchScalarGridSpec(
            num_scalar_prefetch=0,
            grid=grid,
            in_specs=[
                pl.BlockSpec((tile_p, 1), lambda i: (i, 0)),   # int8 same-speaker column
                pl.BlockSpec((1, feat), lambda i: (0, 0)),     # base row (VMEM-resident)
                pl.BlockSpec((1, feat), lambda i: (0, 0)),     # delta row (VMEM-resident)
            ],
            out_specs=pl.BlockSpec((tile_p, feat), lambda i: (i, 0)),
        ),
        compiler_params=pltpu.CompilerParams(
            dimension_semantics=("parallel",),
            vmem_limit_bytes=32 * 1024 * 1024),
        cost_estimate=pl.CostEstimate(
            flops=2 * pair_num * feat,
            transcendentals=0,
            bytes_accessed=pair_num * (4 * feat + 1) + 8 * feat),
    )(same_col, base, delta)

    # TODO(synk): dropout is treated as eval-mode identity (no RNG mask applied).
    return out


if __name__ == "__main__":
    key = jax.random.PRNGKey(0)
    k_spk, k_dist, k_gen, k_speakers, k_a, k_b = jax.random.split(key, 6)

    emb_size = 32            # config.embedding_size
    n_words = 64
    pair_num = 4357          # > fallback threshold; ragged vs tile size and vs 8

    # torch.nn.Embedding default init: N(0, 1).
    speaker_emb = jax.random.normal(k_spk, (2, emb_size), dtype=jnp.float32)
    distance_emb = jax.random.normal(k_dist, (9, emb_size), dtype=jnp.float32)
    genre_emb = jax.random.normal(k_gen, (7, emb_size), dtype=jnp.float32)
    params = (speaker_emb, distance_emb, genre_emb)

    # Host-side Doc glue (string->int maps live outside the kernel, as in the module).
    genre2int = {g: gi for gi, g in enumerate(['bc', 'bn', 'mz', 'nw', 'pt', 'tc', 'wb'])}
    genre_id = genre2int['nw']
    speaker_map = jax.random.randint(k_speakers, (n_words,), 0, 3, dtype=jnp.int32)

    # link_pairs: random word-index pairs; the module only looks at pairs[0] for distance.
    col_a = jax.random.randint(k_a, (pair_num,), 0, n_words, dtype=jnp.int32)
    col_b = jax.random.randint(k_b, (pair_num,), 0, n_words, dtype=jnp.int32)
    link_pairs = jnp.stack([col_a, col_b], axis=1)
    link_pairs = link_pairs.at[0].set(jnp.array([3, 9], dtype=jnp.int32))   # distance = 6

    out = pairwise_encoder_forward(link_pairs, speaker_map, genre_id, params)
    out = jax.block_until_ready(out)

    # Pure-JAX reference (plain gathers, same math as the PyTorch forward).
    pair_spk = speaker_map[link_pairs]
    same_speaker = (pair_spk[:, 0] == pair_spk[:, 1]).astype(jnp.int32)
    distance = (link_pairs[0, 1] - link_pairs[0, 0]).astype(jnp.int32)
    log_d = jnp.minimum(jnp.floor(jnp.log2(distance.astype(jnp.float32))), 6.0).astype(jnp.int32)
    dist_idx = jnp.where(distance < 5, distance - 1, log_d + 2)
    ref = jnp.concatenate(
        [speaker_emb[same_speaker],
         jnp.broadcast_to(distance_emb[dist_idx], (pair_num, emb_size)),
         jnp.broadcast_to(genre_emb[genre_id], (pair_num, emb_size))], axis=1)

    assert out.shape == (pair_num, 3 * emb_size)
    assert jnp.allclose(out, ref, atol=2e-6, rtol=1e-6), "pallas path mismatch vs reference"

    # Small-P fallback path (plain jnp) must agree as well.
    out_small = jax.block_until_ready(
        pairwise_encoder_forward(link_pairs[:10], speaker_map, genre_id, params))
    assert jnp.allclose(out_small, ref[:10], atol=2e-6, rtol=1e-6), "fallback mismatch"

    print("KERNEL_OK")
</pallas_src>

<mosaic_0001>
module attributes {stable_mosaic.version = 11 : i64} {
  func.func @_pairwise_fma_kernel(%arg0: i32, %arg1: memref<1280x1xi8, #tpu.memory_space<vmem>>, %arg2: memref<1x96xf32, #tpu.memory_space<vmem>>, %arg3: memref<1x96xf32, #tpu.memory_space<vmem>>, %arg4: memref<1280x96xf32, #tpu.memory_space<vmem>>) attributes {dimension_semantics = [#tpu.dimension_semantics<parallel>], iteration_bounds = array<i64: 4>, scalar_prefetch = 0 : i64, scratch_operands = 0 : i64, tpu.core_type = #tpu.core_type<tc>, window_params = [{transform_indices = @transform_0, window_bounds = array<i64: 1280, 1>}, {pipeline_mode = #tpu.pipeline_mode<synchronous>, transform_indices = @transform_1, window_bounds = array<i64: 1, 96>}, {pipeline_mode = #tpu.pipeline_mode<synchronous>, transform_indices = @transform_2, window_bounds = array<i64: 1, 96>}, {transform_indices = @transform_3, window_bounds = array<i64: 1280, 96>}]} {
    %c0 = arith.constant 0 : index
    %c0_0 = arith.constant 0 : index
    %0 = vector.load %arg1[%c0, %c0_0] : memref<1280x1xi8, #tpu.memory_space<vmem>>, vector<1280x1xi8>
    %1 = arith.sitofp %0 : vector<1280x1xi8> to vector<1280x1xf32>
    %2 = vector.shape_cast %1 : vector<1280x1xf32> to vector<1280x1xf32>
    %3 = vector.broadcast %2 : vector<1280x1xf32> to vector<1280x96xf32>
    %c0_1 = arith.constant 0 : index
    %c0_2 = arith.constant 0 : index
    %4 = vector.load %arg2[%c0_1, %c0_2] : memref<1x96xf32, #tpu.memory_space<vmem>>, vector<1x96xf32>
    %5 = vector.shape_cast %4 : vector<1x96xf32> to vector<1x96xf32>
    %6 = vector.broadcast %5 : vector<1x96xf32> to vector<1280x96xf32>
    %c0_3 = arith.constant 0 : index
    %c0_4 = arith.constant 0 : index
    %7 = vector.load %arg3[%c0_3, %c0_4] : memref<1x96xf32, #tpu.memory_space<vmem>>, vector<1x96xf32>
    %8 = vector.shape_cast %7 : vector<1x96xf32> to vector<1x96xf32>
    %9 = vector.broadcast %8 : vector<1x96xf32> to vector<1280x96xf32>
    %10 = arith.mulf %3, %9 : vector<1280x96xf32>
    %11 = arith.addf %6, %10 : vector<1280x96xf32>
    %c0_5 = arith.constant 0 : index
    %c0_6 = arith.constant 0 : index
    %12 = vector.load %arg4[%c0_5, %c0_6] : memref<1280x96xf32, #tpu.memory_space<vmem>>, vector<1280x96xf32>
    tpu.vector_store %arg4[%c0_5, %c0_6], %11 {strides = array<i32>} : memref<1280x96xf32, #tpu.memory_space<vmem>>, vector<1280x96xf32>,
    return
  }
  func.func @transform_0(%arg0: i32) -> (i32, i32) {
    %c0_i32 = arith.constant 0 : i32
    %c0_i32_0 = arith.constant 0 : i32
    return %arg0, %c0_i32 : i32, i32
  }
  func.func @transform_1(%arg0: i32) -> (i32, i32) {
    %c0_i32 = arith.constant 0 : i32
    %c0_i32_0 = arith.constant 0 : i32
    %c0_i32_1 = arith.constant 0 : i32
    return %c0_i32, %c0_i32_0 : i32, i32
  }
  func.func @transform_2(%arg0: i32) -> (i32, i32) {
    %c0_i32 = arith.constant 0 : i32
    %c0_i32_0 = arith.constant 0 : i32
    %c0_i32_1 = arith.constant 0 : i32
    return %c0_i32, %c0_i32_0 : i32, i32
  }
  func.func @transform_3(%arg0: i32) -> (i32, i32) {
    %c0_i32 = arith.constant 0 : i32
    %c0_i32_0 = arith.constant 0 : i32
    return %arg0, %c0_i32 : i32, i32
  }
}

</mosaic_0001>

<llo_original>
// kernel: tpu_custom_call.1
$region0: #{tpu_custom_call.1}
  #allocation0 [shape = 'u32[]', space=smem, size = 0x4, offset = 0x4, fixed_abs, tag = 'smem constant byte address 0x4 - core index']
  #allocation1 [shape = 'u32[144,128]{1,0:T(1,128)}', space=vmem, size = 0x12000, scoped, tag = 'internal scratch']
  %s0 = inlined_call_operand.vmem [shape: s8[5120,1], index: 0, kind: input, shape index: {}]
  %s1 = inlined_call_operand.hbm [shape: f32[1,96], index: 1, kind: input, shape index: {}]
  %s2 = inlined_call_operand.hbm [shape: f32[1,96], index: 2, kind: input, shape index: {}]
  %s3 = inlined_call_operand.vmem [shape: f32[4357,96], index: 3, kind: output, shape index: {}]
  %s4 = sld [smem:[#allocation0]]
  $region101: #{tpu_custom_call.1} parent=0
    _
  %s6 = ssub.s32 1, %s4
  %s7 = scalar_select 0, %s6, %s4
  $region1: #{tpu_custom_call.1} parent=0
    #allocation2 [shape = 'u8[512]{0}', space=vmem, size = 0x400, scoped, tag = 'input window, operand 1, single buffered']
    #allocation3 [shape = 's32[2]{0}', space=sflag, size = 0x8, scoped, tag = 'scoped memory for tpu_custom_call.1']
    #allocation4 [shape = 'u8[512]{0}', space=vmem, size = 0x400, scoped, tag = 'input window, operand 2, single buffered']
    #allocation5 [shape = 's32[1]{0}', space=sflag, size = 0x4, scoped, tag = 'scoped memory for tpu_custom_call.1']
    #allocation6 [shape = 'u8[1310720]{0}', space=vmem, size = 0x140000, scoped, tag = 'output window, operand 0']
    %8 = vsyncpa [#allocation3], 0
    %9 = vsyncpa [#allocation5], 0
    loop: start=0, step=1, limit=6
    $region2: #{tpu_custom_call.1} parent=1 // loop_pre_header
      _
    $region3: #{tpu_custom_call.1} parent=1 // loop_header
      %s11 = sphi 0, %s15
      %p12 = scmp.ge.s32.totalorder %s11, 6
      %s21 = sphi 0, %s23
      %s24 = sphi 0, %s21
      %s25 = sphi 0, %s24
      %s41 = sphi 0, %s25
      %s45 = sphi 0, %s45
      %s47 = sphi 0, %s45
      %s48 = sphi 0, %s47
      %s62 = sphi 0, %s48
      %s66 = sphi 0, %s66
      %s68 = sphi 0, %s66
      %s69 = sphi 0, %s68
      %s83 = sphi 0, %s69
      %s89 = sphi 0, %s91
      %s92 = sphi 0, %s89
      %s93 = sphi 0, %s92
      %s109 = sphi 0, %s93
    $region4: #{tpu_custom_call.1} parent=1 // loop_header_branch
      %14 = sbr.rel (%p12) target = $region8
    $region5: #{tpu_custom_call.1} parent=1 // loop_body
      %s16 = ssub.s32 %s11, 1
      %s17 = ssub.s32 %s11, 2
      %s18 = sadd.s32 %s11, 1
      %s19 = ssub.s32 %s11, %s18
      %p20 = scmp.eq.s32.totalorder %s19, 0
      %s22 = sadd.s32 %s21, 1
      %s23 = scalar_select %p20, %s21, %s22
      %p26 = pneg %p20
      %p27 = scmp.eq.s32.totalorder %s11, 3
      %p28 = por %p26, %p27
      %p29 = scmp.ne.s32.totalorder %s21, %s24
      %p30 = scmp.eq.s32.totalorder %s11, 0
      %p31 = por %p29, %p30
      %p32 = scmp.ne.s32.totalorder %s21, %s24
      %p33 = scmp.eq.s32.totalorder %s16, 3
      %p34 = por %p32, %p33
      %p35 = scmp.ne.s32.totalorder %s24, %s25
      %p36 = scmp.eq.s32.totalorder %s16, 0
      %p37 = por %p35, %p36
      %p38 = scmp.ne.s32.totalorder %s24, %s25
      %p39 = scmp.eq.s32.totalorder %s17, 3
      %p40 = por %p38, %p39
      %p42 = scmp.ne.s32.totalorder %s25, %s41
      %p43 = scmp.eq.s32.totalorder %s17, 0
      %p44 = por %p42, %p43
      %s46 = sadd.s32 %s45, 1
      %p49 = scmp.eq.s32.totalorder %s11, 3
      %p50 = scmp.ne.s32.totalorder %s45, %s47
      %p51 = scmp.eq.s32.totalorder %s11, 0
      %p52 = por %p50, %p51
      %p53 = scmp.ne.s32.totalorder %s45, %s47
      %p54 = scmp.eq.s32.totalorder %s16, 3
      %p55 = por %p53, %p54
      %p56 = scmp.ne.s32.totalorder %s47, %s48
      %p57 = scmp.eq.s32.totalorder %s16, 0
      %p58 = por %p56, %p57
      %p59 = scmp.ne.s32.totalorder %s47, %s48
      %p60 = scmp.eq.s32.totalorder %s17, 3
      %p61 = por %p59, %p60
      %p63 = scmp.ne.s32.totalorder %s48, %s62
      %p64 = scmp.eq.s32.totalorder %s17, 0
      %p65 = por %p63, %p64
      %s67 = sadd.s32 %s66, 1
      %p70 = scmp.eq.s32.totalorder %s11, 3
      %p71 = scmp.ne.s32.totalorder %s66, %s68
      %p72 = scmp.eq.s32.totalorder %s11, 0
      %p73 = por %p71, %p72
      %p74 = scmp.ne.s32.totalorder %s66, %s68
      %p75 = scmp.eq.s32.totalorder %s16, 3
      %p76 = por %p74, %p75
      %p77 = scmp.ne.s32.totalorder %s68, %s69
      %p78 = scmp.eq.s32.totalorder %s16, 0
      %p79 = por %p77, %p78
      %p80 = scmp.ne.s32.totalorder %s68, %s69
      %p81 = scmp.eq.s32.totalorder %s17, 3
      %p82 = por %p80, %p81
      %p84 = scmp.ne.s32.totalorder %s69, %s83
      %p85 = scmp.eq.s32.totalorder %s17, 0
      %p86 = por %p84, %p85
      %s87 = ssub.s32 %s11, %s18
      %p88 = scmp.eq.s32.totalorder %s87, 0
      %s90 = sadd.s32 %s89, 1
      %s91 = scalar_select %p88, %s89, %s90
      %p94 = pneg %p88
      %p95 = scmp.eq.s32.totalorder %s11, 3
      %p96 = por %p94, %p95
      %p97 = scmp.ne.s32.totalorder %s89, %s92
      %p98 = scmp.eq.s32.totalorder %s11, 0
      %p99 = por %p97, %p98
      %p100 = scmp.ne.s32.totalorder %s89, %s92
      %p101 = scmp.eq.s32.totalorder %s16, 3
      %p102 = por %p100, %p101
      %p103 = scmp.ne.s32.totalorder %s92, %s93
      %p104 = scmp.eq.s32.totalorder %s16, 0
      %p105 = por %p103, %p104
      %p106 = scmp.ne.s32.totalorder %s92, %s93
      %p107 = scmp.eq.s32.totalorder %s17, 3
      %p108 = por %p106, %p107
      %p110 = scmp.ne.s32.totalorder %s93, %s109
      %p111 = scmp.eq.s32.totalorder %s17, 0
      %p112 = por %p110, %p111
      %p113 = scmp.le.s32.totalorder 1, %s11
      %p114 = scmp.lt.s32.totalorder %s11, 5
      %p115 = pnand %p113, %p114
      %p116 = pneg %p115
      // Predicated region
      $region9: #{tpu_custom_call.1} parent=5 // pred_check
        _
      $region10: #{tpu_custom_call.1} parent=5 // pred_check_branch
        %118 = sbr.rel (%p115) target = $region12
      $region11: #{tpu_custom_call.1} parent=5 // pred_region
        %s119 = ssub.s32 %s11, 1
        // Predicated region
        $region13: #{tpu_custom_call.1} parent=11 // pred_check
          %p120 = pneg %p58
        $region14: #{tpu_custom_call.1} parent=11 // pred_check_branch
          %122 = sbr.rel (%p120) target = $region16
        $region15: #{tpu_custom_call.1} parent=11 // pred_region
          %s124 = ssub.s32 16, 16
          %125 = vsyncadd [#allocation3], %s124
          %s127 = sshll.u32 [#allocation2], 4
          %s128 = int_to_ptr.vmem [resolvable:$true] %s127
          %130 = dma.hbm_to_vmem [thread:$0]  %s1, 16, %s128, [#allocation3]
        $region16: #{tpu_custom_call.1} parent=11 // pred_fallthru
          _
        // Predicated region
        $region17: #{tpu_custom_call.1} parent=11 // pred_check
          %p131 = pneg %p79
        $region18: #{tpu_custom_call.1} parent=11 // pred_check_branch
          %133 = sbr.rel (%p131) target = $region20
        $region19: #{tpu_custom_call.1} parent=11 // pred_region
          %s135 = ssub.s32 16, 16
          %136 = vsyncadd [#allocation5], %s135
          %s138 = sshll.u32 [#allocation4], 4
          %s139 = int_to_ptr.vmem [resolvable:$true] %s138
          %141 = dma.hbm_to_vmem [thread:$0]  %s2, 16, %s139, [#allocation5]
        $region20: #{tpu_custom_call.1} parent=11 // pred_fallthru
          _
      $region12: #{tpu_custom_call.1} parent=5 // pred_fallthru
        _
      %p142 = scmp.lt.s32.totalorder %s11, 4
      // Predicated region
      $region21: #{tpu_custom_call.1} parent=5 // pred_check
        %p143 = pneg %p142
      $region22: #{tpu_custom_call.1} parent=5 // pred_check_branch
        %145 = sbr.rel (%p143) target = $region24
      $region23: #{tpu_custom_call.1} parent=5 // pred_region
        // Predicated region
        $region25: #{tpu_custom_call.1} parent=23 // pred_check
          %p146 = pneg %p31
        $region26: #{tpu_custom_call.1} parent=23 // pred_check_branch
          %148 = sbr.rel (%p146) target = $region28
        $region27: #{tpu_custom_call.1} parent=23 // pred_region
          %s149 = smul.u32 160, %s11
          %p150 = scmp.lt.s32.totalorder %s149, 639
          %s151 = scalar_select %p150, %s149, 639
          %s152 = smul.addr %s151, 2
          %s153 = scalar_lea.vmem %s0, %s152
          %s154 = smul.u32 160, %s11
        $region28: #{tpu_custom_call.1} parent=23 // pred_fallthru
          _
      $region24: #{tpu_custom_call.1} parent=5 // pred_fallthru
        _
      %p155 = scmp.le.s32.totalorder 1, %s11
      %p156 = scmp.lt.s32.totalorder %s11, 5
      %p157 = pnand %p155, %p156
      %p158 = pneg %p157
      // Predicated region
      $region29: #{tpu_custom_call.1} parent=5 // pred_check
        _
      $region30: #{tpu_custom_call.1} parent=5 // pred_check_branch
        %160 = sbr.rel (%p157) target = $region32
      $region31: #{tpu_custom_call.1} parent=5 // pred_region
        %s161 = ssub.s32 %s11, 1
        // Predicated region
        $region33: #{tpu_custom_call.1} parent=31 // pred_check
          %p162 = pneg %p58
        $region34: #{tpu_custom_call.1} parent=31 // pred_check_branch
          %164 = sbr.rel (%p162) target = $region36
        $region35: #{tpu_custom_call.1} parent=31 // pred_region
          %165 = dma.done [#allocation3], 16
        $region36: #{tpu_custom_call.1} parent=31 // pred_fallthru
          _
        // Predicated region
        $region37: #{tpu_custom_call.1} parent=31 // pred_check
          %p166 = pneg %p79
        $region38: #{tpu_custom_call.1} parent=31 // pred_check_branch
          %168 = sbr.rel (%p166) target = $region40
        $region39: #{tpu_custom_call.1} parent=31 // pred_region
          %169 = dma.done [#allocation5], 16
        $region40: #{tpu_custom_call.1} parent=31 // pred_fallthru
          _
        %s170 = smul.u32 160, %s16
        %p171 = scmp.lt.s32.totalorder %s170, 639
        %s172 = scalar_select %p171, %s170, 639
        %s173 = smul.addr %s172, 2
        %s174 = scalar_lea.vmem %s0, %s173
        %p175 = pneg %p37
        %p176 = pneg %p34
        %p177 = pneg %p58
        %p178 = pneg %p55
        %p179 = pneg %p79
        %p180 = pneg %p76
        %p181 = pneg %p105
        %p182 = pneg %p102
        %s183 = sand.u32 %s92, 1
        %s184 = sand.u32 %s92, 1
        %s185 = smul.addr %s184, 1280
        %s186 = scalar_lea.vmem [#allocation6], %s185
        %s187 = smul.u32 160, %s16
        %p188 = scmp.lt.s32.totalorder %s187, 639
        %s189 = scalar_select %p188, %s187, 639
        %s190 = smul.addr %s189, 2
        %s191 = scalar_lea.vmem %s0, %s190
        %s192 = smul.u32 160, %s16
        %s193 = smul.u32 160, %s16
        %s194 = ssub.s32 545, %s193
        %p195 = scmp.lt.s32.totalorder %s194, 160
        %s196 = scalar_select %p195, %s194, 160
        %s197 = smul.u32 128, %s196
        %v198 = vld [vmem:[%s191] sm:$0x3]
        %v199 = vld [vmem:[%s191 + $0x2] sm:$0x3]
        %v200 = vld [vmem:[%s191 + $0x4] sm:$0x3]
        %v201 = vld [vmem:[%s191 + $0x6] sm:$0x3]
        %v202 = vld [vmem:[%s191 + $0x8] sm:$0x3]
        %v203 = vld [vmem:[%s191 + $0xa] sm:$0x3]
        %v204 = vld [vmem:[%s191 + $0xc] sm:$0x3]
        %v205 = vld [vmem:[%s191 + $0xe] sm:$0x3]
        %v206 = vld [vmem:[%s191 + $0x10] sm:$0x3]
        %v207 = vld [vmem:[%s191 + $0x12] sm:$0x3]
        %v208 = vld [vmem:[%s191 + $0x14] sm:$0x3]
        %v209 = vld [vmem:[%s191 + $0x16] sm:$0x3]
        %v210 = vld [vmem:[%s191 + $0x18] sm:$0x3]
        %v211 = vld [vmem:[%s191 + $0x1a] sm:$0x3]
        %v212 = vld [vmem:[%s191 + $0x1c] sm:$0x3]
        %v213 = vld [vmem:[%s191 + $0x1e] sm:$0x3]
        %v214 = vld [vmem:[%s191 + $0x20] sm:$0x3]
        %v215 = vld [vmem:[%s191 + $0x22] sm:$0x3]
        %v216 = vld [vmem:[%s191 + $0x24] sm:$0x3]
        %v217 = vld [vmem:[%s191 + $0x26] sm:$0x3]
        %v218 = vld [vmem:[%s191 + $0x28] sm:$0x3]
        %v219 = vld [vmem:[%s191 + $0x2a] sm:$0x3]
        %v220 = vld [vmem:[%s191 + $0x2c] sm:$0x3]
        %v221 = vld [vmem:[%s191 + $0x2e] sm:$0x3]
        %v222 = vld [vmem:[%s191 + $0x30] sm:$0x3]
        %v223 = vld [vmem:[%s191 + $0x32] sm:$0x3]
        %v224 = vld [vmem:[%s191 + $0x34] sm:$0x3]
        %v225 = vld [vmem:[%s191 + $0x36] sm:$0x3]
        %v226 = vld [vmem:[%s191 + $0x38] sm:$0x3]
        %v227 = vld [vmem:[%s191 + $0x3a] sm:$0x3]
        %v228 = vld [vmem:[%s191 + $0x3c] sm:$0x3]
        %v229 = vld [vmem:[%s191 + $0x3e] sm:$0x3]
        %v230 = vld [vmem:[%s191 + $0x40] sm:$0x3]
        %v231 = vld [vmem:[%s191 + $0x42] sm:$0x3]
        %v232 = vld [vmem:[%s191 + $0x44] sm:$0x3]
        %v233 = vld [vmem:[%s191 + $0x46] sm:$0x3]
        %v234 = vld [vmem:[%s191 + $0x48] sm:$0x3]
        %v235 = vld [vmem:[%s191 + $0x4a] sm:$0x3]
        %v236 = vld [vmem:[%s191 + $0x4c] sm:$0x3]
        %v237 = vld [vmem:[%s191 + $0x4e] sm:$0x3]
        %v238 = vld [vmem:[%s191 + $0x50] sm:$0x3]
        %v239 = vld [vmem:[%s191 + $0x52] sm:$0x3]
        %v240 = vld [vmem:[%s191 + $0x54] sm:$0x3]
        %v241 = vld [vmem:[%s191 + $0x56] sm:$0x3]
        %v242 = vld [vmem:[%s191 + $0x58] sm:$0x3]
        %v243 = vld [vmem:[%s191 + $0x5a] sm:$0x3]
        %v244 = vld [vmem:[%s191 + $0x5c] sm:$0x3]
        %v245 = vld [vmem:[%s191 + $0x5e] sm:$0x3]
        %v246 = vld [vmem:[%s191 + $0x60] sm:$0x3]
        %v247 = vld [vmem:[%s191 + $0x62] sm:$0x3]
        %v248 = vld [vmem:[%s191 + $0x64] sm:$0x3]
        %v249 = vld [vmem:[%s191 + $0x66] sm:$0x3]
        %v250 = vld [vmem:[%s191 + $0x68] sm:$0x3]
        %v251 = vld [vmem:[%s191 + $0x6a] sm:$0x3]
        %v252 = vld [vmem:[%s191 + $0x6c] sm:$0x3]
        %v253 = vld [vmem:[%s191 + $0x6e] sm:$0x3]
        %v254 = vld [vmem:[%s191 + $0x70] sm:$0x3]
        %v255 = vld [vmem:[%s191 + $0x72] sm:$0x3]
        %v256 = vld [vmem:[%s191 + $0x74] sm:$0x3]
        %v257 = vld [vmem:[%s191 + $0x76] sm:$0x3]
        %v258 = vld [vmem:[%s191 + $0x78] sm:$0x3]
        %v259 = vld [vmem:[%s191 + $0x7a] sm:$0x3]
        %v260 = vld [vmem:[%s191 + $0x7c] sm:$0x3]
        %v261 = vld [vmem:[%s191 + $0x7e] sm:$0x3]
        %v262 = vld [vmem:[%s191 + $0x80] sm:$0x3]
        %v263 = vld [vmem:[%s191 + $0x82] sm:$0x3]
        %v264 = vld [vmem:[%s191 + $0x84] sm:$0x3]
        %v265 = vld [vmem:[%s191 + $0x86] sm:$0x3]
        %v266 = vld [vmem:[%s191 + $0x88] sm:$0x3]
        %v267 = vld [vmem:[%s191 + $0x8a] sm:$0x3]
        %v268 = vld [vmem:[%s191 + $0x8c] sm:$0x3]
        %v269 = vld [vmem:[%s191 + $0x8e] sm:$0x3]
        %v270 = vld [vmem:[%s191 + $0x90] sm:$0x3]
        %v271 = vld [vmem:[%s191 + $0x92] sm:$0x3]
        %v272 = vld [vmem:[%s191 + $0x94] sm:$0x3]
        %v273 = vld [vmem:[%s191 + $0x96] sm:$0x3]
        %v274 = vld [vmem:[%s191 + $0x98] sm:$0x3]
        %v275 = vld [vmem:[%s191 + $0x9a] sm:$0x3]
        %v276 = vld [vmem:[%s191 + $0x9c] sm:$0x3]
        %v277 = vld [vmem:[%s191 + $0x9e] sm:$0x3]
        %v278 = vld [vmem:[%s191 + $0xa0] sm:$0x3]
        %v279 = vld [vmem:[%s191 + $0xa2] sm:$0x3]
        %v280 = vld [vmem:[%s191 + $0xa4] sm:$0x3]
        %v281 = vld [vmem:[%s191 + $0xa6] sm:$0x3]
        %v282 = vld [vmem:[%s191 + $0xa8] sm:$0x3]
        %v283 = vld [vmem:[%s191 + $0xaa] sm:$0x3]
        %v284 = vld [vmem:[%s191 + $0xac] sm:$0x3]
        %v285 = vld [vmem:[%s191 + $0xae] sm:$0x3]
        %v286 = vld [vmem:[%s191 + $0xb0] sm:$0x3]
        %v287 = vld [vmem:[%s191 + $0xb2] sm:$0x3]
        %v288 = vld [vmem:[%s191 + $0xb4] sm:$0x3]
        %v289 = vld [vmem:[%s191 + $0xb6] sm:$0x3]
        %v290 = vld [vmem:[%s191 + $0xb8] sm:$0x3]
        %v291 = vld [vmem:[%s191 + $0xba] sm:$0x3]
        %v292 = vld [vmem:[%s191 + $0xbc] sm:$0x3]
        %v293 = vld [vmem:[%s191 + $0xbe] sm:$0x3]
        %v294 = vld [vmem:[%s191 + $0xc0] sm:$0x3]
        %v295 = vld [vmem:[%s191 + $0xc2] sm:$0x3]
        %v296 = vld [vmem:[%s191 + $0xc4] sm:$0x3]
        %v297 = vld [vmem:[%s191 + $0xc6] sm:$0x3]
        %v298 = vld [vmem:[%s191 + $0xc8] sm:$0x3]
        %v299 = vld [vmem:[%s191 + $0xca] sm:$0x3]
        %v300 = vld [vmem:[%s191 + $0xcc] sm:$0x3]
        %v301 = vld [vmem:[%s191 + $0xce] sm:$0x3]
        %v302 = vld [vmem:[%s191 + $0xd0] sm:$0x3]
        %v303 = vld [vmem:[%s191 + $0xd2] sm:$0x3]
        %v304 = vld [vmem:[%s191 + $0xd4] sm:$0x3]
        %v305 = vld [vmem:[%s191 + $0xd6] sm:$0x3]
        %v306 = vld [vmem:[%s191 + $0xd8] sm:$0x3]
        %v307 = vld [vmem:[%s191 + $0xda] sm:$0x3]
        %v308 = vld [vmem:[%s191 + $0xdc] sm:$0x3]
        %v309 = vld [vmem:[%s191 + $0xde] sm:$0x3]
        %v310 = vld [vmem:[%s191 + $0xe0] sm:$0x3]
        %v311 = vld [vmem:[%s191 + $0xe2] sm:$0x3]
        %v312 = vld [vmem:[%s191 + $0xe4] sm:$0x3]
        %v313 = vld [vmem:[%s191 + $0xe6] sm:$0x3]
        %v314 = vld [vmem:[%s191 + $0xe8] sm:$0x3]
        %v315 = vld [vmem:[%s191 + $0xea] sm:$0x3]
        %v316 = vld [vmem:[%s191 + $0xec] sm:$0x3]
        %v317 = vld [vmem:[%s191 + $0xee] sm:$0x3]
        %v318 = vld [vmem:[%s191 + $0xf0] sm:$0x3]
        %v319 = vld [vmem:[%s191 + $0xf2] sm:$0x3]
        %v320 = vld [vmem:[%s191 + $0xf4] sm:$0x3]
        %v321 = vld [vmem:[%s191 + $0xf6] sm:$0x3]
        %v322 = vld [vmem:[%s191 + $0xf8] sm:$0x3]
        %v323 = vld [vmem:[%s191 + $0xfa] sm:$0x3]
        %v324 = vld [vmem:[%s191 + $0xfc] sm:$0x3]
        %v325 = vld [vmem:[%s191 + $0xfe] sm:$0x3]
        %v326 = vld [vmem:[%s191 + $0x100] sm:$0x3]
        %v327 = vld [vmem:[%s191 + $0x102] sm:$0x3]
        %v328 = vld [vmem:[%s191 + $0x104] sm:$0x3]
        %v329 = vld [vmem:[%s191 + $0x106] sm:$0x3]
        %v330 = vld [vmem:[%s191 + $0x108] sm:$0x3]
        %v331 = vld [vmem:[%s191 + $0x10a] sm:$0x3]
        %v332 = vld [vmem:[%s191 + $0x10c] sm:$0x3]
        %v333 = vld [vmem:[%s191 + $0x10e] sm:$0x3]
        %v334 = vld [vmem:[%s191 + $0x110] sm:$0x3]
        %v335 = vld [vmem:[%s191 + $0x112] sm:$0x3]
        %v336 = vld [vmem:[%s191 + $0x114] sm:$0x3]
        %v337 = vld [vmem:[%s191 + $0x116] sm:$0x3]
        %v338 = vld [vmem:[%s191 + $0x118] sm:$0x3]
        %v339 = vld [vmem:[%s191 + $0x11a] sm:$0x3]
        %v340 = vld [vmem:[%s191 + $0x11c] sm:$0x3]
        %v341 = vld [vmem:[%s191 + $0x11e] sm:$0x3]
        %v342 = vld [vmem:[%s191 + $0x120] sm:$0x3]
        %v343 = vld [vmem:[%s191 + $0x122] sm:$0x3]
        %v344 = vld [vmem:[%s191 + $0x124] sm:$0x3]
        %v345 = vld [vmem:[%s191 + $0x126] sm:$0x3]
        %v346 = vld [vmem:[%s191 + $0x128] sm:$0x3]
        %v347 = vld [vmem:[%s191 + $0x12a] sm:$0x3]
        %v348 = vld [vmem:[%s191 + $0x12c] sm:$0x3]
        %v349 = vld [vmem:[%s191 + $0x12e] sm:$0x3]
        %v350 = vld [vmem:[%s191 + $0x130] sm:$0x3]
        %v351 = vld [vmem:[%s191 + $0x132] sm:$0x3]
        %v352 = vld [vmem:[%s191 + $0x134] sm:$0x3]
        %v353 = vld [vmem:[%s191 + $0x136] sm:$0x3]
        %v354 = vld [vmem:[%s191 + $0x138] sm:$0x3]
        %v355 = vld [vmem:[%s191 + $0x13a] sm:$0x3]
        %v356 = vld [vmem:[%s191 + $0x13c] sm:$0x3]
        %v357 = vld [vmem:[%s191 + $0x13e] sm:$0x3]
        %v358 = vunpack.c.0.s8 %v198
        %v359 = vunpack.c.0.s8 %v199
        %v360 = vunpack.c.0.s8 %v200
        %v361 = vunpack.c.0.s8 %v201
        %v362 = vunpack.c.0.s8 %v202
        %v363 = vunpack.c.0.s8 %v203
        %v364 = vunpack.c.0.s8 %v204
        %v365 = vunpack.c.0.s8 %v205
        %v366 = vunpack.c.0.s8 %v206
        %v367 = vunpack.c.0.s8 %v207
        %v368 = vunpack.c.0.s8 %v208
        %v369 = vunpack.c.0.s8 %v209
        %v370 = vunpack.c.0.s8 %v210
        %v371 = vunpack.c.0.s8 %v211
        %v372 = vunpack.c.0.s8 %v212
        %v373 = vunpack.c.0.s8 %v213
        %v374 = vunpack.c.0.s8 %v214
        %v375 = vunpack.c.0.s8 %v215
        %v376 = vunpack.c.0.s8 %v216
        %v377 = vunpack.c.0.s8 %v217
        %v378 = vunpack.c.0.s8 %v218
        %v379 = vunpack.c.0.s8 %v219
        %v380 = vunpack.c.0.s8 %v220
        %v381 = vunpack.c.0.s8 %v221
        %v382 = vunpack.c.0.s8 %v222
        %v383 = vunpack.c.0.s8 %v223
        %v384 = vunpack.c.0.s8 %v224
        %v385 = vunpack.c.0.s8 %v225
        %v386 = vunpack.c.0.s8 %v226
        %v387 = vunpack.c.0.s8 %v227
        %v388 = vunpack.c.0.s8 %v228
        %v389 = vunpack.c.0.s8 %v229
        %v390 = vunpack.c.0.s8 %v230
        %v391 = vunpack.c.0.s8 %v231
        %v392 = vunpack.c.0.s8 %v232
        %v393 = vunpack.c.0.s8 %v233
        %v394 = vunpack.c.0.s8 %v234
        %v395 = vunpack.c.0.s8 %v235
        %v396 = vunpack.c.0.s8 %v236
        %v397 = vunpack.c.0.s8 %v237
        %v398 = vunpack.c.0.s8 %v238
        %v399 = vunpack.c.0.s8 %v239
        %v400 = vunpack.c.0.s8 %v240
        %v401 = vunpack.c.0.s8 %v241
        %v402 = vunpack.c.0.s8 %v242
        %v403 = vunpack.c.0.s8 %v243
        %v404 = vunpack.c.0.s8 %v244
        %v405 = vunpack.c.0.s8 %v245
        %v406 = vunpack.c.0.s8 %v246
        %v407 = vunpack.c.0.s8 %v247
        %v408 = vunpack.c.0.s8 %v248
        %v409 = vunpack.c.0.s8 %v249
        %v410 = vunpack.c.0.s8 %v250
        %v411 = vunpack.c.0.s8 %v251
        %v412 = vunpack.c.0.s8 %v252
        %v413 = vunpack.c.0.s8 %v253
        %v414 = vunpack.c.0.s8 %v254
        %v415 = vunpack.c.0.s8 %v255
        %v416 = vunpack.c.0.s8 %v256
        %v417 = vunpack.c.0.s8 %v257
        %v418 = vunpack.c.0.s8 %v258
        %v419 = vunpack.c.0.s8 %v259
        %v420 = vunpack.c.0.s8 %v260
        %v421 = vunpack.c.0.s8 %v261
        %v422 = vunpack.c.0.s8 %v262
        %v423 = vunpack.c.0.s8 %v263
        %v424 = vunpack.c.0.s8 %v264
        %v425 = vunpack.c.0.s8 %v265
        %v426 = vunpack.c.0.s8 %v266
        %v427 = vunpack.c.0.s8 %v267
        %v428 = vunpack.c.0.s8 %v268
        %v429 = vunpack.c.0.s8 %v269
        %v430 = vunpack.c.0.s8 %v270
        %v431 = vunpack.c.0.s8 %v271
        %v432 = vunpack.c.0.s8 %v272
        %v433 = vunpack.c.0.s8 %v273
        %v434 = vunpack.c.0.s8 %v274
        %v435 = vunpack.c.0.s8 %v275
        %v436 = vunpack.c.0.s8 %v276
        %v437 = vunpack.c.0.s8 %v277
        %v438 = vunpack.c.0.s8 %v278
        %v439 = vunpack.c.0.s8 %v279
        %v440 = vunpack.c.0.s8 %v280
        %v441 = vunpack.c.0.s8 %v281
        %v442 = vunpack.c.0.s8 %v282
        %v443 = vunpack.c.0.s8 %v283
        %v444 = vunpack.c.0.s8 %v284
        %v445 = vunpack.c.0.s8 %v285
        %v446 = vunpack.c.0.s8 %v286
        %v447 = vunpack.c.0.s8 %v287
        %v448 = vunpack.c.0.s8 %v288
        %v449 = vunpack.c.0.s8 %v289
        %v450 = vunpack.c.0.s8 %v290
        %v451 = vunpack.c.0.s8 %v291
        %v452 = vunpack.c.0.s8 %v292
        %v453 = vunpack.c.0.s8 %v293
        %v454 = vunpack.c.0.s8 %v294
        %v455 = vunpack.c.0.s8 %v295
        %v456 = vunpack.c.0.s8 %v296
        %v457 = vunpack.c.0.s8 %v297
        %v458 = vunpack.c.0.s8 %v298
        %v459 = vunpack.c.0.s8 %v299
        %v460 = vunpack.c.0.s8 %v300
        %v461 = vunpack.c.0.s8 %v301
        %v462 = vunpack.c.0.s8 %v302
        %v463 = vunpack.c.0.s8 %v303
        %v464 = vunpack.c.0.s8 %v304
        %v465 = vunpack.c.0.s8 %v305
        %v466 = vunpack.c.0.s8 %v306
        %v467 = vunpack.c.0.s8 %v307
        %v468 = vunpack.c.0.s8 %v308
        %v469 = vunpack.c.0.s8 %v309
        %v470 = vunpack.c.0.s8 %v310
        %v471 = vunpack.c.0.s8 %v311
        %v472 = vunpack.c.0.s8 %v312
        %v473 = vunpack.c.0.s8 %v313
        %v474 = vunpack.c.0.s8 %v314
        %v475 = vunpack.c.0.s8 %v315
        %v476 = vunpack.c.0.s8 %v316
        %v477 = vunpack.c.0.s8 %v317
        %v478 = vunpack.c.0.s8 %v318
        %v479 = vunpack.c.0.s8 %v319
        %v480 = vunpack.c.0.s8 %v320
        %v481 = vunpack.c.0.s8 %v321
        %v482 = vunpack.c.0.s8 %v322
        %v483 = vunpack.c.0.s8 %v323
        %v484 = vunpack.c.0.s8 %v324
        %v485 = vunpack.c.0.s8 %v325
        %v486 = vunpack.c.0.s8 %v326
        %v487 = vunpack.c.0.s8 %v327
        %v488 = vunpack.c.0.s8 %v328
        %v489 = vunpack.c.0.s8 %v329
        %v490 = vunpack.c.0.s8 %v330
        %v491 = vunpack.c.0.s8 %v331
        %v492 = vunpack.c.0.s8 %v332
        %v493 = vunpack.c.0.s8 %v333
        %v494 = vunpack.c.0.s8 %v334
        %v495 = vunpack.c.0.s8 %v335
        %v496 = vunpack.c.0.s8 %v336
        %v497 = vunpack.c.0.s8 %v337
        %v498 = vunpack.c.0.s8 %v338
        %v499 = vunpack.c.0.s8 %v339
        %v500 = vunpack.c.0.s8 %v340
        %v501 = vunpack.c.0.s8 %v341
        %v502 = vunpack.c.0.s8 %v342
        %v503 = vunpack.c.0.s8 %v343
        %v504 = vunpack.c.0.s8 %v344
        %v505 = vunpack.c.0.s8 %v345
        %v506 = vunpack.c.0.s8 %v346
        %v507 = vunpack.c.0.s8 %v347
        %v508 = vunpack.c.0.s8 %v348
        %v509 = vunpack.c.0.s8 %v349
        %v510 = vunpack.c.0.s8 %v350
        %v511 = vunpack.c.0.s8 %v351
        %v512 = vunpack.c.0.s8 %v352
        %v513 = vunpack.c.0.s8 %v353
        %v514 = vunpack.c.0.s8 %v354
        %v515 = vunpack.c.0.s8 %v355
        %v516 = vunpack.c.0.s8 %v356
        %v517 = vunpack.c.0.s8 %v357
        %v518 = vcvt.s32.f32 %v358
        %v519 = vcvt.s32.f32 %v359
        %v520 = vcvt.s32.f32 %v360
        %v521 = vcvt.s32.f32 %v361
        %v522 = vcvt.s32.f32 %v362
        %v523 = vcvt.s32.f32 %v363
        %v524 = vcvt.s32.f32 %v364
        %v525 = vcvt.s32.f32 %v365
        %v526 = vcvt.s32.f32 %v366
        %v527 = vcvt.s32.f32 %v367
        %v528 = vcvt.s32.f32 %v368
        %v529 = vcvt.s32.f32 %v369
        %v530 = vcvt.s32.f32 %v370
        %v531 = vcvt.s32.f32 %v371
        %v532 = vcvt.s32.f32 %v372
        %v533 = vcvt.s32.f32 %v373
        %v534 = vcvt.s32.f32 %v374
        %v535 = vcvt.s32.f32 %v375
        %v536 = vcvt.s32.f32 %v376
        %v537 = vcvt.s32.f32 %v377
        %v538 = vcvt.s32.f32 %v378
        %v539 = vcvt.s32.f32 %v379
        %v540 = vcvt.s32.f32 %v380
        %v541 = vcvt.s32.f32 %v381
        %v542 = vcvt.s32.f32 %v382
        %v543 = vcvt.s32.f32 %v383
        %v544 = vcvt.s32.f32 %v384
        %v545 = vcvt.s32.f32 %v385
        %v546 = vcvt.s32.f32 %v386
        %v547 = vcvt.s32.f32 %v387
        %v548 = vcvt.s32.f32 %v388
        %v549 = vcvt.s32.f32 %v389
        %v550 = vcvt.s32.f32 %v390
        %v551 = vcvt.s32.f32 %v391
        %v552 = vcvt.s32.f32 %v392
        %v553 = vcvt.s32.f32 %v393
        %v554 = vcvt.s32.f32 %v394
        %v555 = vcvt.s32.f32 %v395
        %v556 = vcvt.s32.f32 %v396
        %v557 = vcvt.s32.f32 %v397
        %v558 = vcvt.s32.f32 %v398
        %v559 = vcvt.s32.f32 %v399
        %v560 = vcvt.s32.f32 %v400
        %v561 = vcvt.s32.f32 %v401
        %v562 = vcvt.s32.f32 %v402
        %v563 = vcvt.s32.f32 %v403
        %v564 = vcvt.s32.f32 %v404
        %v565 = vcvt.s32.f32 %v405
        %v566 = vcvt.s32.f32 %v406
        %v567 = vcvt.s32.f32 %v407
        %v568 = vcvt.s32.f32 %v408
        %v569 = vcvt.s32.f32 %v409
        %v570 = vcvt.s32.f32 %v410
        %v571 = vcvt.s32.f32 %v411
        %v572 = vcvt.s32.f32 %v412
        %v573 = vcvt.s32.f32 %v413
        %v574 = vcvt.s32.f32 %v414
        %v575 = vcvt.s32.f32 %v415
        %v576 = vcvt.s32.f32 %v416
        %v577 = vcvt.s32.f32 %v417
        %v578 = vcvt.s32.f32 %v418
        %v579 = vcvt.s32.f32 %v419
        %v580 = vcvt.s32.f32 %v420
        %v581 = vcvt.s32.f32 %v421
        %v582 = vcvt.s32.f32 %v422
        %v583 = vcvt.s32.f32 %v423
        %v584 = vcvt.s32.f32 %v424
        %v585 = vcvt.s32.f32 %v425
        %v586 = vcvt.s32.f32 %v426
        %v587 = vcvt.s32.f32 %v427
        %v588 = vcvt.s32.f32 %v428
        %v589 = vcvt.s32.f32 %v429
        %v590 = vcvt.s32.f32 %v430
        %v591 = vcvt.s32.f32 %v431
        %v592 = vcvt.s32.f32 %v432
        %v593 = vcvt.s32.f32 %v433
        %v594 = vcvt.s32.f32 %v434
        %v595 = vcvt.s32.f32 %v435
        %v596 = vcvt.s32.f32 %v436
        %v597 = vcvt.s32.f32 %v437
        %v598 = vcvt.s32.f32 %v438
        %v599 = vcvt.s32.f32 %v439
        %v600 = vcvt.s32.f32 %v440
        %v601 = vcvt.s32.f32 %v441
        %v602 = vcvt.s32.f32 %v442
        %v603 = vcvt.s32.f32 %v443
        %v604 = vcvt.s32.f32 %v444
        %v605 = vcvt.s32.f32 %v445
        %v606 = vcvt.s32.f32 %v446
        %v607 = vcvt.s32.f32 %v447
        %v608 = vcvt.s32.f32 %v448
        %v609 = vcvt.s32.f32 %v449
        %v610 = vcvt.s32.f32 %v450
        %v611 = vcvt.s32.f32 %v451
        %v612 = vcvt.s32.f32 %v452
        %v613 = vcvt.s32.f32 %v453
        %v614 = vcvt.s32.f32 %v454
        %v615 = vcvt.s32.f32 %v455
        %v616 = vcvt.s32.f32 %v456
        %v617 = vcvt.s32.f32 %v457
        %v618 = vcvt.s32.f32 %v458
        %v619 = vcvt.s32.f32 %v459
        %v620 = vcvt.s32.f32 %v460
        %v621 = vcvt.s32.f32 %v461
        %v622 = vcvt.s32.f32 %v462
        %v623 = vcvt.s32.f32 %v463
        %v624 = vcvt.s32.f32 %v464
        %v625 = vcvt.s32.f32 %v465
        %v626 = vcvt.s32.f32 %v466
        %v627 = vcvt.s32.f32 %v467
        %v628 = vcvt.s32.f32 %v468
        %v629 = vcvt.s32.f32 %v469
        %v630 = vcvt.s32.f32 %v470
        %v631 = vcvt.s32.f32 %v471
        %v632 = vcvt.s32.f32 %v472
        %v633 = vcvt.s32.f32 %v473
        %v634 = vcvt.s32.f32 %v474
        %v635 = vcvt.s32.f32 %v475
        %v636 = vcvt.s32.f32 %v476
        %v637 = vcvt.s32.f32 %v477
        %v638 = vcvt.s32.f32 %v478
        %v639 = vcvt.s32.f32 %v479
        %v640 = vcvt.s32.f32 %v480
        %v641 = vcvt.s32.f32 %v481
        %v642 = vcvt.s32.f32 %v482
        %v643 = vcvt.s32.f32 %v483
        %v644 = vcvt.s32.f32 %v484
        %v645 = vcvt.s32.f32 %v485
        %v646 = vcvt.s32.f32 %v486
        %v647 = vcvt.s32.f32 %v487
        %v648 = vcvt.s32.f32 %v488
        %v649 = vcvt.s32.f32 %v489
        %v650 = vcvt.s32.f32 %v490
        %v651 = vcvt.s32.f32 %v491
        %v652 = vcvt.s32.f32 %v492
        %v653 = vcvt.s32.f32 %v493
        %v654 = vcvt.s32.f32 %v494
        %v655 = vcvt.s32.f32 %v495
        %v656 = vcvt.s32.f32 %v496
        %v657 = vcvt.s32.f32 %v497
        %v658 = vcvt.s32.f32 %v498
        %v659 = vcvt.s32.f32 %v499
        %v660 = vcvt.s32.f32 %v500
        %v661 = vcvt.s32.f32 %v501
        %v662 = vcvt.s32.f32 %v502
        %v663 = vcvt.s32.f32 %v503
        %v664 = vcvt.s32.f32 %v504
        %v665 = vcvt.s32.f32 %v505
        %v666 = vcvt.s32.f32 %v506
        %v667 = vcvt.s32.f32 %v507
        %v668 = vcvt.s32.f32 %v508
        %v669 = vcvt.s32.f32 %v509
        %v670 = vcvt.s32.f32 %v510
        %v671 = vcvt.s32.f32 %v511
        %v672 = vcvt.s32.f32 %v512
        %v673 = vcvt.s32.f32 %v513
        %v674 = vcvt.s32.f32 %v514
        %v675 = vcvt.s32.f32 %v515
        %v676 = vcvt.s32.f32 %v516
        %v677 = vcvt.s32.f32 %v517
        %679 = vset.pattern.permute.xlu0 0
        %680 = vperm.xlu0 %679, %v518
        %v681 = vpop.permute.xlu0 %680
        %684 = vset.pattern.permute.xlu0 0
        %685 = vperm.xlu0 %684, %v519
        %v686 = vpop.permute.xlu0 %685
        %689 = vset.pattern.permute.xlu0 0
        %690 = vperm.xlu0 %689, %v520
        %v691 = vpop.permute.xlu0 %690
        %694 = vset.pattern.permute.xlu0 0
        %695 = vperm.xlu0 %694, %v521
        %v696 = vpop.permute.xlu0 %695
        %699 = vset.pattern.permute.xlu0 0
        %700 = vperm.xlu0 %699, %v522
        %v701 = vpop.permute.xlu0 %700
        %704 = vset.pattern.permute.xlu0 0
        %705 = vperm.xlu0 %704, %v523
        %v706 = vpop.permute.xlu0 %705
        %709 = vset.pattern.permute.xlu0 0
        %710 = vperm.xlu0 %709, %v524
        %v711 = vpop.permute.xlu0 %710
        %714 = vset.pattern.permute.xlu0 0
        %715 = vperm.xlu0 %714, %v525
        %v716 = vpop.permute.xlu0 %715
        %719 = vset.pattern.permute.xlu0 0
        %720 = vperm.xlu0 %719, %v526
        %v721 = vpop.permute.xlu0 %720
        %724 = vset.pattern.permute.xlu0 0
        %725 = vperm.xlu0 %724, %v527
        %v726 = vpop.permute.xlu0 %725
        %729 = vset.pattern.permute.xlu0 0
        %730 = vperm.xlu0 %729, %v528
        %v731 = vpop.permute.xlu0 %730
        %734 = vset.pattern.permute.xlu0 0
        %735 = vperm.xlu0 %734, %v529
        %v736 = vpop.permute.xlu0 %735
        %739 = vset.pattern.permute.xlu0 0
        %740 = vperm.xlu0 %739, %v530
        %v741 = vpop.permute.xlu0 %740
        %744 = vset.pattern.permute.xlu0 0
        %745 = vperm.xlu0 %744, %v531
        %v746 = vpop.permute.xlu0 %745
        %749 = vset.pattern.permute.xlu0 0
        %750 = vperm.xlu0 %749, %v532
        %v751 = vpop.permute.xlu0 %750
        %754 = vset.pattern.permute.xlu0 0
        %755 = vperm.xlu0 %754, %v533
        %v756 = vpop.permute.xlu0 %755
        %759 = vset.pattern.permute.xlu0 0
        %760 = vperm.xlu0 %759, %v534
        %v761 = vpop.permute.xlu0 %760
        %764 = vset.pattern.permute.xlu0 0
        %765 = vperm.xlu0 %764, %v535
        %v766 = vpop.permute.xlu0 %765
        %769 = vset.pattern.permute.xlu0 0
        %770 = vperm.xlu0 %769, %v536
        %v771 = vpop.permute.xlu0 %770
        %774 = vset.pattern.permute.xlu0 0
        %775 = vperm.xlu0 %774, %v537
        %v776 = vpop.permute.xlu0 %775
        %779 = vset.pattern.permute.xlu0 0
        %780 = vperm.xlu0 %779, %v538
        %v781 = vpop.permute.xlu0 %780
        %784 = vset.pattern.permute.xlu0 0
        %785 = vperm.xlu0 %784, %v539
        %v786 = vpop.permute.xlu0 %785
        %789 = vset.pattern.permute.xlu0 0
        %790 = vperm.xlu0 %789, %v540
        %v791 = vpop.permute.xlu0 %790
        %794 = vset.pattern.permute.xlu0 0
        %795 = vperm.xlu0 %794, %v541
        %v796 = vpop.permute.xlu0 %795
        %799 = vset.pattern.permute.xlu0 0
        %800 = vperm.xlu0 %799, %v542
        %v801 = vpop.permute.xlu0 %800
        %804 = vset.pattern.permute.xlu0 0
        %805 = vperm.xlu0 %804, %v543
        %v806 = vpop.permute.xlu0 %805
        %809 = vset.pattern.permute.xlu0 0
        %810 = vperm.xlu0 %809, %v544
        %v811 = vpop.permute.xlu0 %810
        %814 = vset.pattern.permute.xlu0 0
        %815 = vperm.xlu0 %814, %v545
        %v816 = vpop.permute.xlu0 %815
        %819 = vset.pattern.permute.xlu0 0
        %820 = vperm.xlu0 %819, %v546
        %v821 = vpop.permute.xlu0 %820
        %824 = vset.pattern.permute.xlu0 0
        %825 = vperm.xlu0 %824, %v547
        %v826 = vpop.permute.xlu0 %825
        %829 = vset.pattern.permute.xlu0 0
        %830 = vperm.xlu0 %829, %v548
        %v831 = vpop.permute.xlu0 %830
        %834 = vset.pattern.permute.xlu0 0
        %835 = vperm.xlu0 %834, %v549
        %v836 = vpop.permute.xlu0 %835
        %839 = vset.pattern.permute.xlu0 0
        %840 = vperm.xlu0 %839, %v550
        %v841 = vpop.permute.xlu0 %840
        %844 = vset.pattern.permute.xlu0 0
        %845 = vperm.xlu0 %844, %v551
        %v846 = vpop.permute.xlu0 %845
        %849 = vset.pattern.permute.xlu0 0
        %850 = vperm.xlu0 %849, %v552
        %v851 = vpop.permute.xlu0 %850
        %854 = vset.pattern.permute.xlu0 0
        %855 = vperm.xlu0 %854, %v553
        %v856 = vpop.permute.xlu0 %855
        %859 = vset.pattern.permute.xlu0 0
        %860 = vperm.xlu0 %859, %v554
        %v861 = vpop.permute.xlu0 %860
        %864 = vset.pattern.permute.xlu0 0
        %865 = vperm.xlu0 %864, %v555
        %v866 = vpop.permute.xlu0 %865
        %869 = vset.pattern.permute.xlu0 0
        %870 = vperm.xlu0 %869, %v556
        %v871 = vpop.permute.xlu0 %870
        %874 = vset.pattern.permute.xlu0 0
        %875 = vperm.xlu0 %874, %v557
        %v876 = vpop.permute.xlu0 %875
        %879 = vset.pattern.permute.xlu0 0
        %880 = vperm.xlu0 %879, %v558
        %v881 = vpop.permute.xlu0 %880
        %884 = vset.pattern.permute.xlu0 0
        %885 = vperm.xlu0 %884, %v559
        %v886 = vpop.permute.xlu0 %885
        %889 = vset.pattern.permute.xlu0 0
        %890 = vperm.xlu0 %889, %v560
        %v891 = vpop.permute.xlu0 %890
        %894 = vset.pattern.permute.xlu0 0
        %895 = vperm.xlu0 %894, %v561
        %v896 = vpop.permute.xlu0 %895
        %899 = vset.pattern.permute.xlu0 0
        %900 = vperm.xlu0 %899, %v562
        %v901 = vpop.permute.xlu0 %900
        %904 = vset.pattern.permute.xlu0 0
        %905 = vperm.xlu0 %904, %v563
        %v906 = vpop.permute.xlu0 %905
        %909 = vset.pattern.permute.xlu0 0
        %910 = vperm.xlu0 %909, %v564
        %v911 = vpop.permute.xlu0 %910
        %914 = vset.pattern.permute.xlu0 0
        %915 = vperm.xlu0 %914, %v565
        %v916 = vpop.permute.xlu0 %915
        %919 = vset.pattern.permute.xlu0 0
        %920 = vperm.xlu0 %919, %v566
        %v921 = vpop.permute.xlu0 %920
        %924 = vset.pattern.permute.xlu0 0
        %925 = vperm.xlu0 %924, %v567
        %v926 = vpop.permute.xlu0 %925
        %929 = vset.pattern.permute.xlu0 0
        %930 = vperm.xlu0 %929, %v568
        %v931 = vpop.permute.xlu0 %930
        %934 = vset.pattern.permute.xlu0 0
        %935 = vperm.xlu0 %934, %v569
        %v936 = vpop.permute.xlu0 %935
        %939 = vset.pattern.permute.xlu0 0
        %940 = vperm.xlu0 %939, %v570
        %v941 = vpop.permute.xlu0 %940
        %944 = vset.pattern.permute.xlu0 0
        %945 = vperm.xlu0 %944, %v571
        %v946 = vpop.permute.xlu0 %945
        %949 = vset.pattern.permute.xlu0 0
        %950 = vperm.xlu0 %949, %v572
        %v951 = vpop.permute.xlu0 %950
        %954 = vset.pattern.permute.xlu0 0
        %955 = vperm.xlu0 %954, %v573
        %v956 = vpop.permute.xlu0 %955
        %959 = vset.pattern.permute.xlu0 0
        %960 = vperm.xlu0 %959, %v574
        %v961 = vpop.permute.xlu0 %960
        %964 = vset.pattern.permute.xlu0 0
        %965 = vperm.xlu0 %964, %v575
        %v966 = vpop.permute.xlu0 %965
        %969 = vset.pattern.permute.xlu0 0
        %970 = vperm.xlu0 %969, %v576
        %v971 = vpop.permute.xlu0 %970
        %974 = vset.pattern.permute.xlu0 0
        %975 = vperm.xlu0 %974, %v577
        %v976 = vpop.permute.xlu0 %975
        %979 = vset.pattern.permute.xlu0 0
        %980 = vperm.xlu0 %979, %v578
        %v981 = vpop.permute.xlu0 %980
        %984 = vset.pattern.permute.xlu0 0
        %985 = vperm.xlu0 %984, %v579
        %v986 = vpop.permute.xlu0 %985
        %989 = vset.pattern.permute.xlu0 0
        %990 = vperm.xlu0 %989, %v580
        %v991 = vpop.permute.xlu0 %990
        %994 = vset.pattern.permute.xlu0 0
        %995 = vperm.xlu0 %994, %v581
        %v996 = vpop.permute.xlu0 %995
        %999 = vset.pattern.permute.xlu0 0
        %1000 = vperm.xlu0 %999, %v582
        %v1001 = vpop.permute.xlu0 %1000
        %1004 = vset.pattern.permute.xlu0 0
        %1005 = vperm.xlu0 %1004, %v583
        %v1006 = vpop.permute.xlu0 %1005
        %1009 = vset.pattern.permute.xlu0 0
        %1010 = vperm.xlu0 %1009, %v584
        %v1011 = vpop.permute.xlu0 %1010
        %1014 = vset.pattern.permute.xlu0 0
        %1015 = vperm.xlu0 %1014, %v585
        %v1016 = vpop.permute.xlu0 %1015
        %1019 = vset.pattern.permute.xlu0 0
        %1020 = vperm.xlu0 %1019, %v586
        %v1021 = vpop.permute.xlu0 %1020
        %1024 = vset.pattern.permute.xlu0 0
        %1025 = vperm.xlu0 %1024, %v587
        %v1026 = vpop.permute.xlu0 %1025
        %1029 = vset.pattern.permute.xlu0 0
        %1030 = vperm.xlu0 %1029, %v588
        %v1031 = vpop.permute.xlu0 %1030
        %1034 = vset.pattern.permute.xlu0 0
        %1035 = vperm.xlu0 %1034, %v589
        %v1036 = vpop.permute.xlu0 %1035
        %1039 = vset.pattern.permute.xlu0 0
        %1040 = vperm.xlu0 %1039, %v590
        %v1041 = vpop.permute.xlu0 %1040
        %1044 = vset.pattern.permute.xlu0 0
        %1045 = vperm.xlu0 %1044, %v591
        %v1046 = vpop.permute.xlu0 %1045
        %1049 = vset.pattern.permute.xlu0 0
        %1050 = vperm.xlu0 %1049, %v592
        %v1051 = vpop.permute.xlu0 %1050
        %1054 = vset.pattern.permute.xlu0 0
        %1055 = vperm.xlu0 %1054, %v593
        %v1056 = vpop.permute.xlu0 %1055
        %1059 = vset.pattern.permute.xlu0 0
        %1060 = vperm.xlu0 %1059, %v594
        %v1061 = vpop.permute.xlu0 %1060
        %1064 = vset.pattern.permute.xlu0 0
        %1065 = vperm.xlu0 %1064, %v595
        %v1066 = vpop.permute.xlu0 %1065
        %1069 = vset.pattern.permute.xlu0 0
        %1070 = vperm.xlu0 %1069, %v596
        %v1071 = vpop.permute.xlu0 %1070
        %1074 = vset.pattern.permute.xlu0 0
        %1075 = vperm.xlu0 %1074, %v597
        %v1076 = vpop.permute.xlu0 %1075
        %1079 = vset.pattern.permute.xlu0 0
        %1080 = vperm.xlu0 %1079, %v598
        %v1081 = vpop.permute.xlu0 %1080
        %1084 = vset.pattern.permute.xlu0 0
        %1085 = vperm.xlu0 %1084, %v599
        %v1086 = vpop.permute.xlu0 %1085
        %1089 = vset.pattern.permute.xlu0 0
        %1090 = vperm.xlu0 %1089, %v600
        %v1091 = vpop.permute.xlu0 %1090
        %1094 = vset.pattern.permute.xlu0 0
        %1095 = vperm.xlu0 %1094, %v601
        %v1096 = vpop.permute.xlu0 %1095
        %1099 = vset.pattern.permute.xlu0 0
        %1100 = vperm.xlu0 %1099, %v602
        %v1101 = vpop.permute.xlu0 %1100
        %1104 = vset.pattern.permute.xlu0 0
        %1105 = vperm.xlu0 %1104, %v603
        %v1106 = vpop.permute.xlu0 %1105
        %1109 = vset.pattern.permute.xlu0 0
        %1110 = vperm.xlu0 %1109, %v604
        %v1111 = vpop.permute.xlu0 %1110
        %1114 = vset.pattern.permute.xlu0 0
        %1115 = vperm.xlu0 %1114, %v605
        %v1116 = vpop.permute.xlu0 %1115
        %1119 = vset.pattern.permute.xlu0 0
        %1120 = vperm.xlu0 %1119, %v606
        %v1121 = vpop.permute.xlu0 %1120
        %1124 = vset.pattern.permute.xlu0 0
        %1125 = vperm.xlu0 %1124, %v607
        %v1126 = vpop.permute.xlu0 %1125
        %1129 = vset.pattern.permute.xlu0 0
        %1130 = vperm.xlu0 %1129, %v608
        %v1131 = vpop.permute.xlu0 %1130
        %1134 = vset.pattern.permute.xlu0 0
        %1135 = vperm.xlu0 %1134, %v609
        %v1136 = vpop.permute.xlu0 %1135
        %1139 = vset.pattern.permute.xlu0 0
        %1140 = vperm.xlu0 %1139, %v610
        %v1141 = vpop.permute.xlu0 %1140
        %1144 = vset.pattern.permute.xlu0 0
        %1145 = vperm.xlu0 %1144, %v611
        %v1146 = vpop.permute.xlu0 %1145
        %1149 = vset.pattern.permute.xlu0 0
        %1150 = vperm.xlu0 %1149, %v612
        %v1151 = vpop.permute.xlu0 %1150
        %1154 = vset.pattern.permute.xlu0 0
        %1155 = vperm.xlu0 %1154, %v613
        %v1156 = vpop.permute.xlu0 %1155
        %1159 = vset.pattern.permute.xlu0 0
        %1160 = vperm.xlu0 %1159, %v614
        %v1161 = vpop.permute.xlu0 %1160
        %1164 = vset.pattern.permute.xlu0 0
        %1165 = vperm.xlu0 %1164, %v615
        %v1166 = vpop.permute.xlu0 %1165
        %1169 = vset.pattern.permute.xlu0 0
        %1170 = vperm.xlu0 %1169, %v616
        %v1171 = vpop.permute.xlu0 %1170
        %1174 = vset.pattern.permute.xlu0 0
        %1175 = vperm.xlu0 %1174, %v617
        %v1176 = vpop.permute.xlu0 %1175
        %1179 = vset.pattern.permute.xlu0 0
        %1180 = vperm.xlu0 %1179, %v618
        %v1181 = vpop.permute.xlu0 %1180
        %1184 = vset.pattern.permute.xlu0 0
        %1185 = vperm.xlu0 %1184, %v619
        %v1186 = vpop.permute.xlu0 %1185
        %1189 = vset.pattern.permute.xlu0 0
        %1190 = vperm.xlu0 %1189, %v620
        %v1191 = vpop.permute.xlu0 %1190
        %1194 = vset.pattern.permute.xlu0 0
        %1195 = vperm.xlu0 %1194, %v621
        %v1196 = vpop.permute.xlu0 %1195
        %1199 = vset.pattern.permute.xlu0 0
        %1200 = vperm.xlu0 %1199, %v622
        %v1201 = vpop.permute.xlu0 %1200
        %1204 = vset.pattern.permute.xlu0 0
        %1205 = vperm.xlu0 %1204, %v623
        %v1206 = vpop.permute.xlu0 %1205
        %1209 = vset.pattern.permute.xlu0 0
        %1210 = vperm.xlu0 %1209, %v624
        %v1211 = vpop.permute.xlu0 %1210
        %1214 = vset.pattern.permute.xlu0 0
        %1215 = vperm.xlu0 %1214, %v625
        %v1216 = vpop.permute.xlu0 %1215
        %1219 = vset.pattern.permute.xlu0 0
        %1220 = vperm.xlu0 %1219, %v626
        %v1221 = vpop.permute.xlu0 %1220
        %1224 = vset.pattern.permute.xlu0 0
        %1225 = vperm.xlu0 %1224, %v627
        %v1226 = vpop.permute.xlu0 %1225
        %1229 = vset.pattern.permute.xlu0 0
        %1230 = vperm.xlu0 %1229, %v628
        %v1231 = vpop.permute.xlu0 %1230
        %1234 = vset.pattern.permute.xlu0 0
        %1235 = vperm.xlu0 %1234, %v629
        %v1236 = vpop.permute.xlu0 %1235
        %1239 = vset.pattern.permute.xlu0 0
        %1240 = vperm.xlu0 %1239, %v630
        %v1241 = vpop.permute.xlu0 %1240
        %1244 = vset.pattern.permute.xlu0 0
        %1245 = vperm.xlu0 %1244, %v631
        %v1246 = vpop.permute.xlu0 %1245
        %1249 = vset.pattern.permute.xlu0 0
        %1250 = vperm.xlu0 %1249, %v632
        %v1251 = vpop.permute.xlu0 %1250
        %1254 = vset.pattern.permute.xlu0 0
        %1255 = vperm.xlu0 %1254, %v633
        %v1256 = vpop.permute.xlu0 %1255
        %1259 = vset.pattern.permute.xlu0 0
        %1260 = vperm.xlu0 %1259, %v634
        %v1261 = vpop.permute.xlu0 %1260
        %1264 = vset.pattern.permute.xlu0 0
        %1265 = vperm.xlu0 %1264, %v635
        %v1266 = vpop.permute.xlu0 %1265
        %1269 = vset.pattern.permute.xlu0 0
        %1270 = vperm.xlu0 %1269, %v636
        %v1271 = vpop.permute.xlu0 %1270
        %1274 = vset.pattern.permute.xlu0 0
        %1275 = vperm.xlu0 %1274, %v637
        %v1276 = vpop.permute.xlu0 %1275
        %1279 = vset.pattern.permute.xlu0 0
        %1280 = vperm.xlu0 %1279, %v638
        %v1281 = vpop.permute.xlu0 %1280
        %1284 = vset.pattern.permute.xlu0 0
        %1285 = vperm.xlu0 %1284, %v639
        %v1286 = vpop.permute.xlu0 %1285
        %1289 = vset.pattern.permute.xlu0 0
        %1290 = vperm.xlu0 %1289, %v640
        %v1291 = vpop.permute.xlu0 %1290
        %1294 = vset.pattern.permute.xlu0 0
        %1295 = vperm.xlu0 %1294, %v641
        %v1296 = vpop.permute.xlu0 %1295
        %1299 = vset.pattern.permute.xlu0 0
        %1300 = vperm.xlu0 %1299, %v642
        %v1301 = vpop.permute.xlu0 %1300
        %1304 = vset.pattern.permute.xlu0 0
        %1305 = vperm.xlu0 %1304, %v643
        %v1306 = vpop.permute.xlu0 %1305
        %1309 = vset.pattern.permute.xlu0 0
        %1310 = vperm.xlu0 %1309, %v644
        %v1311 = vpop.permute.xlu0 %1310
        %1314 = vset.pattern.permute.xlu0 0
        %1315 = vperm.xlu0 %1314, %v645
        %v1316 = vpop.permute.xlu0 %1315
        %1319 = vset.pattern.permute.xlu0 0
        %1320 = vperm.xlu0 %1319, %v646
        %v1321 = vpop.permute.xlu0 %1320
        %1324 = vset.pattern.permute.xlu0 0
        %1325 = vperm.xlu0 %1324, %v647
        %v1326 = vpop.permute.xlu0 %1325
        %1329 = vset.pattern.permute.xlu0 0
        %1330 = vperm.xlu0 %1329, %v648
        %v1331 = vpop.permute.xlu0 %1330
        %1334 = vset.pattern.permute.xlu0 0
        %1335 = vperm.xlu0 %1334, %v649
        %v1336 = vpop.permute.xlu0 %1335
        %1339 = vset.pattern.permute.xlu0 0
        %1340 = vperm.xlu0 %1339, %v650
        %v1341 = vpop.permute.xlu0 %1340
        %1344 = vset.pattern.permute.xlu0 0
        %1345 = vperm.xlu0 %1344, %v651
        %v1346 = vpop.permute.xlu0 %1345
        %1349 = vset.pattern.permute.xlu0 0
        %1350 = vperm.xlu0 %1349, %v652
        %v1351 = vpop.permute.xlu0 %1350
        %1354 = vset.pattern.permute.xlu0 0
        %1355 = vperm.xlu0 %1354, %v653
        %v1356 = vpop.permute.xlu0 %1355
        %1359 = vset.pattern.permute.xlu0 0
        %1360 = vperm.xlu0 %1359, %v654
        %v1361 = vpop.permute.xlu0 %1360
        %1364 = vset.pattern.permute.xlu0 0
        %1365 = vperm.xlu0 %1364, %v655
        %v1366 = vpop.permute.xlu0 %1365
        %1369 = vset.pattern.permute.xlu0 0
        %1370 = vperm.xlu0 %1369, %v656
        %v1371 = vpop.permute.xlu0 %1370
        %1374 = vset.pattern.permute.xlu0 0
        %1375 = vperm.xlu0 %1374, %v657
        %v1376 = vpop.permute.xlu0 %1375
        %1379 = vset.pattern.permute.xlu0 0
        %1380 = vperm.xlu0 %1379, %v658
        %v1381 = vpop.permute.xlu0 %1380
        %1384 = vset.pattern.permute.xlu0 0
        %1385 = vperm.xlu0 %1384, %v659
        %v1386 = vpop.permute.xlu0 %1385
        %1389 = vset.pattern.permute.xlu0 0
        %1390 = vperm.xlu0 %1389, %v660
        %v1391 = vpop.permute.xlu0 %1390
        %1394 = vset.pattern.permute.xlu0 0
        %1395 = vperm.xlu0 %1394, %v661
        %v1396 = vpop.permute.xlu0 %1395
        %1399 = vset.pattern.permute.xlu0 0
        %1400 = vperm.xlu0 %1399, %v662
        %v1401 = vpop.permute.xlu0 %1400
        %1404 = vset.pattern.permute.xlu0 0
        %1405 = vperm.xlu0 %1404, %v663
        %v1406 = vpop.permute.xlu0 %1405
        %1409 = vset.pattern.permute.xlu0 0
        %1410 = vperm.xlu0 %1409, %v664
        %v1411 = vpop.permute.xlu0 %1410
        %1414 = vset.pattern.permute.xlu0 0
        %1415 = vperm.xlu0 %1414, %v665
        %v1416 = vpop.permute.xlu0 %1415
        %1419 = vset.pattern.permute.xlu0 0
        %1420 = vperm.xlu0 %1419, %v666
        %v1421 = vpop.permute.xlu0 %1420
        %1424 = vset.pattern.permute.xlu0 0
        %1425 = vperm.xlu0 %1424, %v667
        %v1426 = vpop.permute.xlu0 %1425
        %1429 = vset.pattern.permute.xlu0 0
        %1430 = vperm.xlu0 %1429, %v668
        %v1431 = vpop.permute.xlu0 %1430
        %1434 = vset.pattern.permute.xlu0 0
        %1435 = vperm.xlu0 %1434, %v669
        %v1436 = vpop.permute.xlu0 %1435
        %1439 = vset.pattern.permute.xlu0 0
        %1440 = vperm.xlu0 %1439, %v670
        %v1441 = vpop.permute.xlu0 %1440
        %1444 = vset.pattern.permute.xlu0 0
        %1445 = vperm.xlu0 %1444, %v671
        %v1446 = vpop.permute.xlu0 %1445
        %1449 = vset.pattern.permute.xlu0 0
        %1450 = vperm.xlu0 %1449, %v672
        %v1451 = vpop.permute.xlu0 %1450
        %1454 = vset.pattern.permute.xlu0 0
        %1455 = vperm.xlu0 %1454, %v673
        %v1456 = vpop.permute.xlu0 %1455
        %1459 = vset.pattern.permute.xlu0 0
        %1460 = vperm.xlu0 %1459, %v674
        %v1461 = vpop.permute.xlu0 %1460
        %1464 = vset.pattern.permute.xlu0 0
        %1465 = vperm.xlu0 %1464, %v675
        %v1466 = vpop.permute.xlu0 %1465
        %1469 = vset.pattern.permute.xlu0 0
        %1470 = vperm.xlu0 %1469, %v676
        %v1471 = vpop.permute.xlu0 %1470
        %1474 = vset.pattern.permute.xlu0 0
        %1475 = vperm.xlu0 %1474, %v677
        %v1476 = vpop.permute.xlu0 %1475
        %v1478 = vld [vmem:[#allocation2] sm:$0x1]
        %v1480 = vlaneseq
        %v1481 = vshrl.u32 %v1480, 7
        %v1482 = vsub.s32 0, %v1481
        %v1483 = vrot.slane %v1478, %v1482
        %v1485 = vld [vmem:[#allocation4] sm:$0x1]
        %v1487 = vlaneseq
        %v1488 = vshrl.u32 %v1487, 7
        %v1489 = vsub.s32 0, %v1488
        %v1490 = vrot.slane %v1485, %v1489
        %v1492 = vmul.f32 %v681, %v1490
        %v1493 = vmul.f32 %v686, %v1490
        %v1494 = vmul.f32 %v691, %v1490
        %v1495 = vmul.f32 %v696, %v1490
        %v1496 = vmul.f32 %v701, %v1490
        %v1497 = vmul.f32 %v706, %v1490
        %v1498 = vmul.f32 %v711, %v1490
        %v1499 = vmul.f32 %v716, %v1490
        %v1500 = vmul.f32 %v721, %v1490
        %v1501 = vmul.f32 %v726, %v1490
        %v1502 = vmul.f32 %v731, %v1490
        %v1503 = vmul.f32 %v736, %v1490
        %v1504 = vmul.f32 %v741, %v1490
        %v1505 = vmul.f32 %v746, %v1490
        %v1506 = vmul.f32 %v751, %v1490
        %v1507 = vmul.f32 %v756, %v1490
        %v1508 = vmul.f32 %v761, %v1490
        %v1509 = vmul.f32 %v766, %v1490
        %v1510 = vmul.f32 %v771, %v1490
        %v1511 = vmul.f32 %v776, %v1490
        %v1512 = vmul.f32 %v781, %v1490
        %v1513 = vmul.f32 %v786, %v1490
        %v1514 = vmul.f32 %v791, %v1490
        %v1515 = vmul.f32 %v796, %v1490
        %v1516 = vmul.f32 %v801, %v1490
        %v1517 = vmul.f32 %v806, %v1490
        %v1518 = vmul.f32 %v811, %v1490
        %v1519 = vmul.f32 %v816, %v1490
        %v1520 = vmul.f32 %v821, %v1490
        %v1521 = vmul.f32 %v826, %v1490
        %v1522 = vmul.f32 %v831, %v1490
        %v1523 = vmul.f32 %v836, %v1490
        %v1524 = vmul.f32 %v841, %v1490
        %v1525 = vmul.f32 %v846, %v1490
        %v1526 = vmul.f32 %v851, %v1490
        %v1527 = vmul.f32 %v856, %v1490
        %v1528 = vmul.f32 %v861, %v1490
        %v1529 = vmul.f32 %v866, %v1490
        %v1530 = vmul.f32 %v871, %v1490
        %v1531 = vmul.f32 %v876, %v1490
        %v1532 = vmul.f32 %v881, %v1490
        %v1533 = vmul.f32 %v886, %v1490
        %v1534 = vmul.f32 %v891, %v1490
        %v1535 = vmul.f32 %v896, %v1490
        %v1536 = vmul.f32 %v901, %v1490
        %v1537 = vmul.f32 %v906, %v1490
        %v1538 = vmul.f32 %v911, %v1490
        %v1539 = vmul.f32 %v916, %v1490
        %v1540 = vmul.f32 %v921, %v1490
        %v1541 = vmul.f32 %v926, %v1490
        %v1542 = vmul.f32 %v931, %v1490
        %v1543 = vmul.f32 %v936, %v1490
        %v1544 = vmul.f32 %v941, %v1490
        %v1545 = vmul.f32 %v946, %v1490
        %v1546 = vmul.f32 %v951, %v1490
        %v1547 = vmul.f32 %v956, %v1490
        %v1548 = vmul.f32 %v961, %v1490
        %v1549 = vmul.f32 %v966, %v1490
        %v1550 = vmul.f32 %v971, %v1490
        %v1551 = vmul.f32 %v976, %v1490
        %v1552 = vmul.f32 %v981, %v1490
        %v1553 = vmul.f32 %v986, %v1490
        %v1554 = vmul.f32 %v991, %v1490
        %v1555 = vmul.f32 %v996, %v1490
        %v1556 = vmul.f32 %v1001, %v1490
        %v1557 = vmul.f32 %v1006, %v1490
        %v1558 = vmul.f32 %v1011, %v1490
        %v1559 = vmul.f32 %v1016, %v1490
        %v1560 = vmul.f32 %v1021, %v1490
        %v1561 = vmul.f32 %v1026, %v1490
        %v1562 = vmul.f32 %v1031, %v1490
        %v1563 = vmul.f32 %v1036, %v1490
        %v1564 = vmul.f32 %v1041, %v1490
        %v1565 = vmul.f32 %v1046, %v1490
        %v1566 = vmul.f32 %v1051, %v1490
        %v1567 = vmul.f32 %v1056, %v1490
        %v1568 = vmul.f32 %v1061, %v1490
        %v1569 = vmul.f32 %v1066, %v1490
        %v1570 = vmul.f32 %v1071, %v1490
        %v1571 = vmul.f32 %v1076, %v1490
        %v1572 = vmul.f32 %v1081, %v1490
        %v1573 = vmul.f32 %v1086, %v1490
        %v1574 = vmul.f32 %v1091, %v1490
        %v1575 = vmul.f32 %v1096, %v1490
        %v1576 = vmul.f32 %v1101, %v1490
        %v1577 = vmul.f32 %v1106, %v1490
        %v1578 = vmul.f32 %v1111, %v1490
        %v1579 = vmul.f32 %v1116, %v1490
        %v1580 = vmul.f32 %v1121, %v1490
        %v1581 = vmul.f32 %v1126, %v1490
        %v1582 = vmul.f32 %v1131, %v1490
        %v1583 = vmul.f32 %v1136, %v1490
        %v1584 = vmul.f32 %v1141, %v1490
        %v1585 = vmul.f32 %v1146, %v1490
        %v1586 = vmul.f32 %v1151, %v1490
        %v1587 = vmul.f32 %v1156, %v1490
        %v1588 = vmul.f32 %v1161, %v1490
        %v1589 = vmul.f32 %v1166, %v1490
        %v1590 = vmul.f32 %v1171, %v1490
        %v1591 = vmul.f32 %v1176, %v1490
        %v1592 = vmul.f32 %v1181, %v1490
        %v1593 = vmul.f32 %v1186, %v1490
        %v1594 = vmul.f32 %v1191, %v1490
        %v1595 = vmul.f32 %v1196, %v1490
        %v1596 = vmul.f32 %v1201, %v1490
        %v1597 = vmul.f32 %v1206, %v1490
        %v1598 = vmul.f32 %v1211, %v1490
        %v1599 = vmul.f32 %v1216, %v1490
        %v1600 = vmul.f32 %v1221, %v1490
        %v1601 = vmul.f32 %v1226, %v1490
        %v1602 = vmul.f32 %v1231, %v1490
        %v1603 = vmul.f32 %v1236, %v1490
        %v1604 = vmul.f32 %v1241, %v1490
        %v1605 = vmul.f32 %v1246, %v1490
        %v1606 = vmul.f32 %v1251, %v1490
        %v1607 = vmul.f32 %v1256, %v1490
        %v1608 = vmul.f32 %v1261, %v1490
        %v1609 = vmul.f32 %v1266, %v1490
        %v1610 = vmul.f32 %v1271, %v1490
        %v1611 = vmul.f32 %v1276, %v1490
        %v1612 = vmul.f32 %v1281, %v1490
        %v1613 = vmul.f32 %v1286, %v1490
        %v1614 = vmul.f32 %v1291, %v1490
        %v1615 = vmul.f32 %v1296, %v1490
        %v1616 = vmul.f32 %v1301, %v1490
        %v1617 = vmul.f32 %v1306, %v1490
        %v1618 = vmul.f32 %v1311, %v1490
        %v1619 = vmul.f32 %v1316, %v1490
        %v1620 = vmul.f32 %v1321, %v1490
        %v1621 = vmul.f32 %v1326, %v1490
        %v1622 = vmul.f32 %v1331, %v1490
        %v1623 = vmul.f32 %v1336, %v1490
        %v1624 = vmul.f32 %v1341, %v1490
        %v1625 = vmul.f32 %v1346, %v1490
        %v1626 = vmul.f32 %v1351, %v1490
        %v1627 = vmul.f32 %v1356, %v1490
        %v1628 = vmul.f32 %v1361, %v1490
        %v1629 = vmul.f32 %v1366, %v1490
        %v1630 = vmul.f32 %v1371, %v1490
        %v1631 = vmul.f32 %v1376, %v1490
        %v1632 = vmul.f32 %v1381, %v1490
        %v1633 = vmul.f32 %v1386, %v1490
        %v1634 = vmul.f32 %v1391, %v1490
        %v1635 = vmul.f32 %v1396, %v1490
        %v1636 = vmul.f32 %v1401, %v1490
        %v1637 = vmul.f32 %v1406, %v1490
        %v1638 = vmul.f32 %v1411, %v1490
        %v1639 = vmul.f32 %v1416, %v1490
        %v1640 = vmul.f32 %v1421, %v1490
        %v1641 = vmul.f32 %v1426, %v1490
        %v1642 = vmul.f32 %v1431, %v1490
        %v1643 = vmul.f32 %v1436, %v1490
        %v1644 = vmul.f32 %v1441, %v1490
        %v1645 = vmul.f32 %v1446, %v1490
        %v1646 = vmul.f32 %v1451, %v1490
        %v1647 = vmul.f32 %v1456, %v1490
        %v1648 = vmul.f32 %v1461, %v1490
        %v1649 = vmul.f32 %v1466, %v1490
        %v1650 = vmul.f32 %v1471, %v1490
        %v1651 = vmul.f32 %v1476, %v1490
        %v1652 = vadd.f32 %v1483, %v1492
        %v1653 = vadd.f32 %v1483, %v1493
        %v1654 = vadd.f32 %v1483, %v1494
        %v1655 = vadd.f32 %v1483, %v1495
        %v1656 = vadd.f32 %v1483, %v1496
        %v1657 = vadd.f32 %v1483, %v1497
        %v1658 = vadd.f32 %v1483, %v1498
        %v1659 = vadd.f32 %v1483, %v1499
        %v1660 = vadd.f32 %v1483, %v1500
        %v1661 = vadd.f32 %v1483, %v1501
        %v1662 = vadd.f32 %v1483, %v1502
        %v1663 = vadd.f32 %v1483, %v1503
        %v1664 = vadd.f32 %v1483, %v1504
        %v1665 = vadd.f32 %v1483, %v1505
        %v1666 = vadd.f32 %v1483, %v1506
        %v1667 = vadd.f32 %v1483, %v1507
        %v1668 = vadd.f32 %v1483, %v1508
        %v1669 = vadd.f32 %v1483, %v1509
        %v1670 = vadd.f32 %v1483, %v1510
        %v1671 = vadd.f32 %v1483, %v1511
        %v1672 = vadd.f32 %v1483, %v1512
        %v1673 = vadd.f32 %v1483, %v1513
        %v1674 = vadd.f32 %v1483, %v1514
        %v1675 = vadd.f32 %v1483, %v1515
        %v1676 = vadd.f32 %v1483, %v1516
        %v1677 = vadd.f32 %v1483, %v1517
        %v1678 = vadd.f32 %v1483, %v1518
        %v1679 = vadd.f32 %v1483, %v1519
        %v1680 = vadd.f32 %v1483, %v1520
        %v1681 = vadd.f32 %v1483, %v1521
        %v1682 = vadd.f32 %v1483, %v1522
        %v1683 = vadd.f32 %v1483, %v1523
        %v1684 = vadd.f32 %v1483, %v1524
        %v1685 = vadd.f32 %v1483, %v1525
        %v1686 = vadd.f32 %v1483, %v1526
        %v1687 = vadd.f32 %v1483, %v1527
        %v1688 = vadd.f32 %v1483, %v1528
        %v1689 = vadd.f32 %v1483, %v1529
        %v1690 = vadd.f32 %v1483, %v1530
        %v1691 = vadd.f32 %v1483, %v1531
        %v1692 = vadd.f32 %v1483, %v1532
        %v1693 = vadd.f32 %v1483, %v1533
        %v1694 = vadd.f32 %v1483, %v1534
        %v1695 = vadd.f32 %v1483, %v1535
        %v1696 = vadd.f32 %v1483, %v1536
        %v1697 = vadd.f32 %v1483, %v1537
        %v1698 = vadd.f32 %v1483, %v1538
        %v1699 = vadd.f32 %v1483, %v1539
        %v1700 = vadd.f32 %v1483, %v1540
        %v1701 = vadd.f32 %v1483, %v1541
        %v1702 = vadd.f32 %v1483, %v1542
        %v1703 = vadd.f32 %v1483, %v1543
        %v1704 = vadd.f32 %v1483, %v1544
        %v1705 = vadd.f32 %v1483, %v1545
        %v1706 = vadd.f32 %v1483, %v1546
        %v1707 = vadd.f32 %v1483, %v1547
        %v1708 = vadd.f32 %v1483, %v1548
        %v1709 = vadd.f32 %v1483, %v1549
        %v1710 = vadd.f32 %v1483, %v1550
        %v1711 = vadd.f32 %v1483, %v1551
        %v1712 = vadd.f32 %v1483, %v1552
        %v1713 = vadd.f32 %v1483, %v1553
        %v1714 = vadd.f32 %v1483, %v1554
        %v1715 = vadd.f32 %v1483, %v1555
        %v1716 = vadd.f32 %v1483, %v1556
        %v1717 = vadd.f32 %v1483, %v1557
        %v1718 = vadd.f32 %v1483, %v1558
        %v1719 = vadd.f32 %v1483, %v1559
        %v1720 = vadd.f32 %v1483, %v1560
        %v1721 = vadd.f32 %v1483, %v1561
        %v1722 = vadd.f32 %v1483, %v1562
        %v1723 = vadd.f32 %v1483, %v1563
        %v1724 = vadd.f32 %v1483, %v1564
        %v1725 = vadd.f32 %v1483, %v1565
        %v1726 = vadd.f32 %v1483, %v1566
        %v1727 = vadd.f32 %v1483, %v1567
        %v1728 = vadd.f32 %v1483, %v1568
        %v1729 = vadd.f32 %v1483, %v1569
        %v1730 = vadd.f32 %v1483, %v1570
        %v1731 = vadd.f32 %v1483, %v1571
        %v1732 = vadd.f32 %v1483, %v1572
        %v1733 = vadd.f32 %v1483, %v1573
        %v1734 = vadd.f32 %v1483, %v1574
        %v1735 = vadd.f32 %v1483, %v1575
        %v1736 = vadd.f32 %v1483, %v1576
        %v1737 = vadd.f32 %v1483, %v1577
        %v1738 = vadd.f32 %v1483, %v1578
        %v1739 = vadd.f32 %v1483, %v1579
        %v1740 = vadd.f32 %v1483, %v1580
        %v1741 = vadd.f32 %v1483, %v1581
        %v1742 = vadd.f32 %v1483, %v1582
        %v1743 = vadd.f32 %v1483, %v1583
        %v1744 = vadd.f32 %v1483, %v1584
        %v1745 = vadd.f32 %v1483, %v1585
        %v1746 = vadd.f32 %v1483, %v1586
        %v1747 = vadd.f32 %v1483, %v1587
        %v1748 = vadd.f32 %v1483, %v1588
        %v1749 = vadd.f32 %v1483, %v1589
        %v1750 = vadd.f32 %v1483, %v1590
        %v1751 = vadd.f32 %v1483, %v1591
        %v1752 = vadd.f32 %v1483, %v1592
        %v1753 = vadd.f32 %v1483, %v1593
        %v1754 = vadd.f32 %v1483, %v1594
        %v1755 = vadd.f32 %v1483, %v1595
        %v1756 = vadd.f32 %v1483, %v1596
        %v1757 = vadd.f32 %v1483, %v1597
        %v1758 = vadd.f32 %v1483, %v1598
        %v1759 = vadd.f32 %v1483, %v1599
        %v1760 = vadd.f32 %v1483, %v1600
        %v1761 = vadd.f32 %v1483, %v1601
        %v1762 = vadd.f32 %v1483, %v1602
        %v1763 = vadd.f32 %v1483, %v1603
        %v1764 = vadd.f32 %v1483, %v1604
        %v1765 = vadd.f32 %v1483, %v1605
        %v1766 = vadd.f32 %v1483, %v1606
        %v1767 = vadd.f32 %v1483, %v1607
        %v1768 = vadd.f32 %v1483, %v1608
        %v1769 = vadd.f32 %v1483, %v1609
        %v1770 = vadd.f32 %v1483, %v1610
        %v1771 = vadd.f32 %v1483, %v1611
        %v1772 = vadd.f32 %v1483, %v1612
        %v1773 = vadd.f32 %v1483, %v1613
        %v1774 = vadd.f32 %v1483, %v1614
        %v1775 = vadd.f32 %v1483, %v1615
        %v1776 = vadd.f32 %v1483, %v1616
        %v1777 = vadd.f32 %v1483, %v1617
        %v1778 = vadd.f32 %v1483, %v1618
        %v1779 = vadd.f32 %v1483, %v1619
        %v1780 = vadd.f32 %v1483, %v1620
        %v1781 = vadd.f32 %v1483, %v1621
        %v1782 = vadd.f32 %v1483, %v1622
        %v1783 = vadd.f32 %v1483, %v1623
        %v1784 = vadd.f32 %v1483, %v1624
        %v1785 = vadd.f32 %v1483, %v1625
        %v1786 = vadd.f32 %v1483, %v1626
        %v1787 = vadd.f32 %v1483, %v1627
        %v1788 = vadd.f32 %v1483, %v1628
        %v1789 = vadd.f32 %v1483, %v1629
        %v1790 = vadd.f32 %v1483, %v1630
        %v1791 = vadd.f32 %v1483, %v1631
        %v1792 = vadd.f32 %v1483, %v1632
        %v1793 = vadd.f32 %v1483, %v1633
        %v1794 = vadd.f32 %v1483, %v1634
        %v1795 = vadd.f32 %v1483, %v1635
        %v1796 = vadd.f32 %v1483, %v1636
        %v1797 = vadd.f32 %v1483, %v1637
        %v1798 = vadd.f32 %v1483, %v1638
        %v1799 = vadd.f32 %v1483, %v1639
        %v1800 = vadd.f32 %v1483, %v1640
        %v1801 = vadd.f32 %v1483, %v1641
        %v1802 = vadd.f32 %v1483, %v1642
        %v1803 = vadd.f32 %v1483, %v1643
        %v1804 = vadd.f32 %v1483, %v1644
        %v1805 = vadd.f32 %v1483, %v1645
        %v1806 = vadd.f32 %v1483, %v1646
        %v1807 = vadd.f32 %v1483, %v1647
        %v1808 = vadd.f32 %v1483, %v1648
        %v1809 = vadd.f32 %v1483, %v1649
        %v1810 = vadd.f32 %v1483, %v1650
        %v1811 = vadd.f32 %v1483, %v1651
        %vm1812 = vcmask 785408
        %1813 = vst.msk [vmem:[%s186] sm:$0xff] %vm1812, %v1652
        %1814 = vst.msk [vmem:[%s186 + $0x8] sm:$0xff] %vm1812, %v1653
        %1815 = vst.msk [vmem:[%s186 + $0x10] sm:$0xff] %vm1812, %v1654
        %1816 = vst.msk [vmem:[%s186 + $0x18] sm:$0xff] %vm1812, %v1655
        %1817 = vst.msk [vmem:[%s186 + $0x20] sm:$0xff] %vm1812, %v1656
        %1818 = vst.msk [vmem:[%s186 + $0x28] sm:$0xff] %vm1812, %v1657
        %1819 = vst.msk [vmem:[%s186 + $0x30] sm:$0xff] %vm1812, %v1658
        %1820 = vst.msk [vmem:[%s186 + $0x38] sm:$0xff] %vm1812, %v1659
        %1821 = vst.msk [vmem:[%s186 + $0x40] sm:$0xff] %vm1812, %v1660
        %1822 = vst.msk [vmem:[%s186 + $0x48] sm:$0xff] %vm1812, %v1661
        %1823 = vst.msk [vmem:[%s186 + $0x50] sm:$0xff] %vm1812, %v1662
        %1824 = vst.msk [vmem:[%s186 + $0x58] sm:$0xff] %vm1812, %v1663
        %1825 = vst.msk [vmem:[%s186 + $0x60] sm:$0xff] %vm1812, %v1664
        %1826 = vst.msk [vmem:[%s186 + $0x68] sm:$0xff] %vm1812, %v1665
        %1827 = vst.msk [vmem:[%s186 + $0x70] sm:$0xff] %vm1812, %v1666
        %1828 = vst.msk [vmem:[%s186 + $0x78] sm:$0xff] %vm1812, %v1667
        %1829 = vst.msk [vmem:[%s186 + $0x80] sm:$0xff] %vm1812, %v1668
        %1830 = vst.msk [vmem:[%s186 + $0x88] sm:$0xff] %vm1812, %v1669
        %1831 = vst.msk [vmem:[%s186 + $0x90] sm:$0xff] %vm1812, %v1670
        %1832 = vst.msk [vmem:[%s186 + $0x98] sm:$0xff] %vm1812, %v1671
        %1833 = vst.msk [vmem:[%s186 + $0xa0] sm:$0xff] %vm1812, %v1672
        %1834 = vst.msk [vmem:[%s186 + $0xa8] sm:$0xff] %vm1812, %v1673
        %1835 = vst.msk [vmem:[%s186 + $0xb0] sm:$0xff] %vm1812, %v1674
        %1836 = vst.msk [vmem:[%s186 + $0xb8] sm:$0xff] %vm1812, %v1675
        %1837 = vst.msk [vmem:[%s186 + $0xc0] sm:$0xff] %vm1812, %v1676
        %1838 = vst.msk [vmem:[%s186 + $0xc8] sm:$0xff] %vm1812, %v1677
        %1839 = vst.msk [vmem:[%s186 + $0xd0] sm:$0xff] %vm1812, %v1678
        %1840 = vst.msk [vmem:[%s186 + $0xd8] sm:$0xff] %vm1812, %v1679
        %1841 = vst.msk [vmem:[%s186 + $0xe0] sm:$0xff] %vm1812, %v1680
        %1842 = vst.msk [vmem:[%s186 + $0xe8] sm:$0xff] %vm1812, %v1681
        %1843 = vst.msk [vmem:[%s186 + $0xf0] sm:$0xff] %vm1812, %v1682
        %1844 = vst.msk [vmem:[%s186 + $0xf8] sm:$0xff] %vm1812, %v1683
        %1845 = vst.msk [vmem:[%s186 + $0x100] sm:$0xff] %vm1812, %v1684
        %1846 = vst.msk [vmem:[%s186 + $0x108] sm:$0xff] %vm1812, %v1685
        %1847 = vst.msk [vmem:[%s186 + $0x110] sm:$0xff] %vm1812, %v1686
        %1848 = vst.msk [vmem:[%s186 + $0x118] sm:$0xff] %vm1812, %v1687
        %1849 = vst.msk [vmem:[%s186 + $0x120] sm:$0xff] %vm1812, %v1688
        %1850 = vst.msk [vmem:[%s186 + $0x128] sm:$0xff] %vm1812, %v1689
        %1851 = vst.msk [vmem:[%s186 + $0x130] sm:$0xff] %vm1812, %v1690
        %1852 = vst.msk [vmem:[%s186 + $0x138] sm:$0xff] %vm1812, %v1691
        %1853 = vst.msk [vmem:[%s186 + $0x140] sm:$0xff] %vm1812, %v1692
        %1854 = vst.msk [vmem:[%s186 + $0x148] sm:$0xff] %vm1812, %v1693
        %1855 = vst.msk [vmem:[%s186 + $0x150] sm:$0xff] %vm1812, %v1694
        %1856 = vst.msk [vmem:[%s186 + $0x158] sm:$0xff] %vm1812, %v1695
        %1857 = vst.msk [vmem:[%s186 + $0x160] sm:$0xff] %vm1812, %v1696
        %1858 = vst.msk [vmem:[%s186 + $0x168] sm:$0xff] %vm1812, %v1697
        %1859 = vst.msk [vmem:[%s186 + $0x170] sm:$0xff] %vm1812, %v1698
        %1860 = vst.msk [vmem:[%s186 + $0x178] sm:$0xff] %vm1812, %v1699
        %1861 = vst.msk [vmem:[%s186 + $0x180] sm:$0xff] %vm1812, %v1700
        %1862 = vst.msk [vmem:[%s186 + $0x188] sm:$0xff] %vm1812, %v1701
        %1863 = vst.msk [vmem:[%s186 + $0x190] sm:$0xff] %vm1812, %v1702
        %1864 = vst.msk [vmem:[%s186 + $0x198] sm:$0xff] %vm1812, %v1703
        %1865 = vst.msk [vmem:[%s186 + $0x1a0] sm:$0xff] %vm1812, %v1704
        %1866 = vst.msk [vmem:[%s186 + $0x1a8] sm:$0xff] %vm1812, %v1705
        %1867 = vst.msk [vmem:[%s186 + $0x1b0] sm:$0xff] %vm1812, %v1706
        %1868 = vst.msk [vmem:[%s186 + $0x1b8] sm:$0xff] %vm1812, %v1707
        %1869 = vst.msk [vmem:[%s186 + $0x1c0] sm:$0xff] %vm1812, %v1708
        %1870 = vst.msk [vmem:[%s186 + $0x1c8] sm:$0xff] %vm1812, %v1709
        %1871 = vst.msk [vmem:[%s186 + $0x1d0] sm:$0xff] %vm1812, %v1710
        %1872 = vst.msk [vmem:[%s186 + $0x1d8] sm:$0xff] %vm1812, %v1711
        %1873 = vst.msk [vmem:[%s186 + $0x1e0] sm:$0xff] %vm1812, %v1712
        %1874 = vst.msk [vmem:[%s186 + $0x1e8] sm:$0xff] %vm1812, %v1713
        %1875 = vst.msk [vmem:[%s186 + $0x1f0] sm:$0xff] %vm1812, %v1714
        %1876 = vst.msk [vmem:[%s186 + $0x1f8] sm:$0xff] %vm1812, %v1715
        %1877 = vst.msk [vmem:[%s186 + $0x200] sm:$0xff] %vm1812, %v1716
        %1878 = vst.msk [vmem:[%s186 + $0x208] sm:$0xff] %vm1812, %v1717
        %1879 = vst.msk [vmem:[%s186 + $0x210] sm:$0xff] %vm1812, %v1718
        %1880 = vst.msk [vmem:[%s186 + $0x218] sm:$0xff] %vm1812, %v1719
        %1881 = vst.msk [vmem:[%s186 + $0x220] sm:$0xff] %vm1812, %v1720
        %1882 = vst.msk [vmem:[%s186 + $0x228] sm:$0xff] %vm1812, %v1721
        %1883 = vst.msk [vmem:[%s186 + $0x230] sm:$0xff] %vm1812, %v1722
        %1884 = vst.msk [vmem:[%s186 + $0x238] sm:$0xff] %vm1812, %v1723
        %1885 = vst.msk [vmem:[%s186 + $0x240] sm:$0xff] %vm1812, %v1724
        %1886 = vst.msk [vmem:[%s186 + $0x248] sm:$0xff] %vm1812, %v1725
        %1887 = vst.msk [vmem:[%s186 + $0x250] sm:$0xff] %vm1812, %v1726
        %1888 = vst.msk [vmem:[%s186 + $0x258] sm:$0xff] %vm1812, %v1727
        %1889 = vst.msk [vmem:[%s186 + $0x260] sm:$0xff] %vm1812, %v1728
        %1890 = vst.msk [vmem:[%s186 + $0x268] sm:$0xff] %vm1812, %v1729
        %1891 = vst.msk [vmem:[%s186 + $0x270] sm:$0xff] %vm1812, %v1730
        %1892 = vst.msk [vmem:[%s186 + $0x278] sm:$0xff] %vm1812, %v1731
        %1893 = vst.msk [vmem:[%s186 + $0x280] sm:$0xff] %vm1812, %v1732
        %1894 = vst.msk [vmem:[%s186 + $0x288] sm:$0xff] %vm1812, %v1733
        %1895 = vst.msk [vmem:[%s186 + $0x290] sm:$0xff] %vm1812, %v1734
        %1896 = vst.msk [vmem:[%s186 + $0x298] sm:$0xff] %vm1812, %v1735
        %1897 = vst.msk [vmem:[%s186 + $0x2a0] sm:$0xff] %vm1812, %v1736
        %1898 = vst.msk [vmem:[%s186 + $0x2a8] sm:$0xff] %vm1812, %v1737
        %1899 = vst.msk [vmem:[%s186 + $0x2b0] sm:$0xff] %vm1812, %v1738
        %1900 = vst.msk [vmem:[%s186 + $0x2b8] sm:$0xff] %vm1812, %v1739
        %1901 = vst.msk [vmem:[%s186 + $0x2c0] sm:$0xff] %vm1812, %v1740
        %1902 = vst.msk [vmem:[%s186 + $0x2c8] sm:$0xff] %vm1812, %v1741
        %1903 = vst.msk [vmem:[%s186 + $0x2d0] sm:$0xff] %vm1812, %v1742
        %1904 = vst.msk [vmem:[%s186 + $0x2d8] sm:$0xff] %vm1812, %v1743
        %1905 = vst.msk [vmem:[%s186 + $0x2e0] sm:$0xff] %vm1812, %v1744
        %1906 = vst.msk [vmem:[%s186 + $0x2e8] sm:$0xff] %vm1812, %v1745
        %1907 = vst.msk [vmem:[%s186 + $0x2f0] sm:$0xff] %vm1812, %v1746
        %1908 = vst.msk [vmem:[%s186 + $0x2f8] sm:$0xff] %vm1812, %v1747
        %1909 = vst.msk [vmem:[%s186 + $0x300] sm:$0xff] %vm1812, %v1748
        %1910 = vst.msk [vmem:[%s186 + $0x308] sm:$0xff] %vm1812, %v1749
        %1911 = vst.msk [vmem:[%s186 + $0x310] sm:$0xff] %vm1812, %v1750
        %1912 = vst.msk [vmem:[%s186 + $0x318] sm:$0xff] %vm1812, %v1751
        %1913 = vst.msk [vmem:[%s186 + $0x320] sm:$0xff] %vm1812, %v1752
        %1914 = vst.msk [vmem:[%s186 + $0x328] sm:$0xff] %vm1812, %v1753
        %1915 = vst.msk [vmem:[%s186 + $0x330] sm:$0xff] %vm1812, %v1754
        %1916 = vst.msk [vmem:[%s186 + $0x338] sm:$0xff] %vm1812, %v1755
        %1917 = vst.msk [vmem:[%s186 + $0x340] sm:$0xff] %vm1812, %v1756
        %1918 = vst.msk [vmem:[%s186 + $0x348] sm:$0xff] %vm1812, %v1757
        %1919 = vst.msk [vmem:[%s186 + $0x350] sm:$0xff] %vm1812, %v1758
        %1920 = vst.msk [vmem:[%s186 + $0x358] sm:$0xff] %vm1812, %v1759
        %1921 = vst.msk [vmem:[%s186 + $0x360] sm:$0xff] %vm1812, %v1760
        %1922 = vst.msk [vmem:[%s186 + $0x368] sm:$0xff] %vm1812, %v1761
        %1923 = vst.msk [vmem:[%s186 + $0x370] sm:$0xff] %vm1812, %v1762
        %1924 = vst.msk [vmem:[%s186 + $0x378] sm:$0xff] %vm1812, %v1763
        %1925 = vst.msk [vmem:[%s186 + $0x380] sm:$0xff] %vm1812, %v1764
        %1926 = vst.msk [vmem:[%s186 + $0x388] sm:$0xff] %vm1812, %v1765
        %1927 = vst.msk [vmem:[%s186 + $0x390] sm:$0xff] %vm1812, %v1766
        %1928 = vst.msk [vmem:[%s186 + $0x398] sm:$0xff] %vm1812, %v1767
        %1929 = vst.msk [vmem:[%s186 + $0x3a0] sm:$0xff] %vm1812, %v1768
        %1930 = vst.msk [vmem:[%s186 + $0x3a8] sm:$0xff] %vm1812, %v1769
        %1931 = vst.msk [vmem:[%s186 + $0x3b0] sm:$0xff] %vm1812, %v1770
        %1932 = vst.msk [vmem:[%s186 + $0x3b8] sm:$0xff] %vm1812, %v1771
        %1933 = vst.msk [vmem:[%s186 + $0x3c0] sm:$0xff] %vm1812, %v1772
        %1934 = vst.msk [vmem:[%s186 + $0x3c8] sm:$0xff] %vm1812, %v1773
        %1935 = vst.msk [vmem:[%s186 + $0x3d0] sm:$0xff] %vm1812, %v1774
        %1936 = vst.msk [vmem:[%s186 + $0x3d8] sm:$0xff] %vm1812, %v1775
        %1937 = vst.msk [vmem:[%s186 + $0x3e0] sm:$0xff] %vm1812, %v1776
        %1938 = vst.msk [vmem:[%s186 + $0x3e8] sm:$0xff] %vm1812, %v1777
        %1939 = vst.msk [vmem:[%s186 + $0x3f0] sm:$0xff] %vm1812, %v1778
        %1940 = vst.msk [vmem:[%s186 + $0x3f8] sm:$0xff] %vm1812, %v1779
        %1941 = vst.msk [vmem:[%s186 + $0x400] sm:$0xff] %vm1812, %v1780
        %1942 = vst.msk [vmem:[%s186 + $0x408] sm:$0xff] %vm1812, %v1781
        %1943 = vst.msk [vmem:[%s186 + $0x410] sm:$0xff] %vm1812, %v1782
        %1944 = vst.msk [vmem:[%s186 + $0x418] sm:$0xff] %vm1812, %v1783
        %1945 = vst.msk [vmem:[%s186 + $0x420] sm:$0xff] %vm1812, %v1784
        %1946 = vst.msk [vmem:[%s186 + $0x428] sm:$0xff] %vm1812, %v1785
        %1947 = vst.msk [vmem:[%s186 + $0x430] sm:$0xff] %vm1812, %v1786
        %1948 = vst.msk [vmem:[%s186 + $0x438] sm:$0xff] %vm1812, %v1787
        %1949 = vst.msk [vmem:[%s186 + $0x440] sm:$0xff] %vm1812, %v1788
        %1950 = vst.msk [vmem:[%s186 + $0x448] sm:$0xff] %vm1812, %v1789
        %1951 = vst.msk [vmem:[%s186 + $0x450] sm:$0xff] %vm1812, %v1790
        %1952 = vst.msk [vmem:[%s186 + $0x458] sm:$0xff] %vm1812, %v1791
        %1953 = vst.msk [vmem:[%s186 + $0x460] sm:$0xff] %vm1812, %v1792
        %1954 = vst.msk [vmem:[%s186 + $0x468] sm:$0xff] %vm1812, %v1793
        %1955 = vst.msk [vmem:[%s186 + $0x470] sm:$0xff] %vm1812, %v1794
        %1956 = vst.msk [vmem:[%s186 + $0x478] sm:$0xff] %vm1812, %v1795
        %1957 = vst.msk [vmem:[%s186 + $0x480] sm:$0xff] %vm1812, %v1796
        %1958 = vst.msk [vmem:[%s186 + $0x488] sm:$0xff] %vm1812, %v1797
        %1959 = vst.msk [vmem:[%s186 + $0x490] sm:$0xff] %vm1812, %v1798
        %1960 = vst.msk [vmem:[%s186 + $0x498] sm:$0xff] %vm1812, %v1799
        %1961 = vst.msk [vmem:[%s186 + $0x4a0] sm:$0xff] %vm1812, %v1800
        %1962 = vst.msk [vmem:[%s186 + $0x4a8] sm:$0xff] %vm1812, %v1801
        %1963 = vst.msk [vmem:[%s186 + $0x4b0] sm:$0xff] %vm1812, %v1802
        %1964 = vst.msk [vmem:[%s186 + $0x4b8] sm:$0xff] %vm1812, %v1803
        %1965 = vst.msk [vmem:[%s186 + $0x4c0] sm:$0xff] %vm1812, %v1804
        %1966 = vst.msk [vmem:[%s186 + $0x4c8] sm:$0xff] %vm1812, %v1805
        %1967 = vst.msk [vmem:[%s186 + $0x4d0] sm:$0xff] %vm1812, %v1806
        %1968 = vst.msk [vmem:[%s186 + $0x4d8] sm:$0xff] %vm1812, %v1807
        %1969 = vst.msk [vmem:[%s186 + $0x4e0] sm:$0xff] %vm1812, %v1808
        %1970 = vst.msk [vmem:[%s186 + $0x4e8] sm:$0xff] %vm1812, %v1809
        %1971 = vst.msk [vmem:[%s186 + $0x4f0] sm:$0xff] %vm1812, %v1810
        %1972 = vst.msk [vmem:[%s186 + $0x4f8] sm:$0xff] %vm1812, %v1811
        %s1973 = sand.u32 %s92, 1
        %s1974 = sand.u32 %s92, 1
        %s1975 = smul.addr %s1974, 1280
        %s1976 = scalar_lea.vmem [#allocation6], %s1975
        // Predicated region
        $region41: #{tpu_custom_call.1} parent=31 // pred_check
          %p1977 = pneg %p102
        $region42: #{tpu_custom_call.1} parent=31 // pred_check_branch
          %1979 = sbr.rel (%p1977) target = $region44
        $region43: #{tpu_custom_call.1} parent=31 // pred_region
          %s1980 = smul.u32 160, %s16
          %s1981 = ssub.s32 545, %s1980
          %p1982 = scmp.lt.s32.totalorder %s1981, 160
          %s1983 = scalar_select %p1982, %s1981, 160
          %s1984 = smul.u32 128, %s1983
          %p1985 = scmp.ne.s32.totalorder 0, %s1984
          %s1986 = smul.addr %s1980, 8
          %s1987 = scalar_lea.vmem %s3, %s1986
          // Predicated region
          $region45: #{tpu_custom_call.1} parent=43 // pred_check
            %p1988 = pneg %p1985
          $region46: #{tpu_custom_call.1} parent=43 // pred_check_branch
            %1990 = sbr.rel (%p1988) target = $region48
          $region47: #{tpu_custom_call.1} parent=43 // pred_region
            // Predicated region
            $region49: #{tpu_custom_call.1} parent=47 // pred_check
              _
            $region50: #{tpu_custom_call.1} parent=47 // pred_check_branch
              %1992 = sbr.rel (0) target = $region52
            $region51: #{tpu_custom_call.1} parent=47 // pred_region
              // Predicated region
              $region71: #{tpu_custom_call.1} parent=51 // pred_check
                _
              $region72: #{tpu_custom_call.1} parent=51 // pred_check_branch
                %2167 = sbr.rel (0) target = $region74
              $region73: #{tpu_custom_call.1} parent=51 // pred_region
                %s2168 = sshrl.u32 %s1983, 6
                // While loop
                $region75: #{tpu_custom_call.1} parent=73 // loop_pre_header
                  _
                $region76: #{tpu_custom_call.1} parent=73 // loop_header
                  %s2170 = sphi 0, %s2172
                  %p2171 = scmp.ge.s32.totalorder %s2170, %s2168
                  %s2175 = sphi 0, %s2308
                  %s2176 = sphi %s1976, %s2311
                  %s2177 = sphi %s1987, %s2312
                $region77: #{tpu_custom_call.1} parent=73 // loop_header_branch
                  %2174 = sbr.rel (%p2171) target = $region81
                $region78: #{tpu_custom_call.1} parent=73 // loop_body
                  %v2178 = vld [vmem:[%s2176] sm:$0xff]
                  %2179 = vst [vmem:[%s2177] sm:$0xff] %v2178
                  %v2180 = vld [vmem:[%s2176 + $0x8] sm:$0xff]
                  %2181 = vst [vmem:[%s2177 + $0x8] sm:$0xff] %v2180
                  %v2182 = vld [vmem:[%s2176 + $0x10] sm:$0xff]
                  %2183 = vst [vmem:[%s2177 + $0x10] sm:$0xff] %v2182
                  %v2184 = vld [vmem:[%s2176 + $0x18] sm:$0xff]
                  %2185 = vst [vmem:[%s2177 + $0x18] sm:$0xff] %v2184
                  %v2186 = vld [vmem:[%s2176 + $0x20] sm:$0xff]
                  %2187 = vst [vmem:[%s2177 + $0x20] sm:$0xff] %v2186
                  %v2188 = vld [vmem:[%s2176 + $0x28] sm:$0xff]
                  %2189 = vst [vmem:[%s2177 + $0x28] sm:$0xff] %v2188
                  %v2190 = vld [vmem:[%s2176 + $0x30] sm:$0xff]
                  %2191 = vst [vmem:[%s2177 + $0x30] sm:$0xff] %v2190
                  %v2192 = vld [vmem:[%s2176 + $0x38] sm:$0xff]
                  %2193 = vst [vmem:[%s2177 + $0x38] sm:$0xff] %v2192
                  %v2194 = vld [vmem:[%s2176 + $0x40] sm:$0xff]
                  %2195 = vst [vmem:[%s2177 + $0x40] sm:$0xff] %v2194
                  %v2196 = vld [vmem:[%s2176 + $0x48] sm:$0xff]
                  %2197 = vst [vmem:[%s2177 + $0x48] sm:$0xff] %v2196
                  %v2198 = vld [vmem:[%s2176 + $0x50] sm:$0xff]
                  %2199 = vst [vmem:[%s2177 + $0x50] sm:$0xff] %v2198
                  %v2200 = vld [vmem:[%s2176 + $0x58] sm:$0xff]
                  %2201 = vst [vmem:[%s2177 + $0x58] sm:$0xff] %v2200
                  %v2202 = vld [vmem:[%s2176 + $0x60] sm:$0xff]
                  %2203 = vst [vmem:[%s2177 + $0x60] sm:$0xff] %v2202
                  %v2204 = vld [vmem:[%s2176 + $0x68] sm:$0xff]
                  %2205 = vst [vmem:[%s2177 + $0x68] sm:$0xff] %v2204
                  %v2206 = vld [vmem:[%s2176 + $0x70] sm:$0xff]
                  %2207 = vst [vmem:[%s2177 + $0x70] sm:$0xff] %v2206
                  %v2208 = vld [vmem:[%s2176 + $0x78] sm:$0xff]
                  %2209 = vst [vmem:[%s2177 + $0x78] sm:$0xff] %v2208
                  %v2210 = vld [vmem:[%s2176 + $0x80] sm:$0xff]
                  %2211 = vst [vmem:[%s2177 + $0x80] sm:$0xff] %v2210
                  %v2212 = vld [vmem:[%s2176 + $0x88] sm:$0xff]
                  %2213 = vst [vmem:[%s2177 + $0x88] sm:$0xff] %v2212
                  %v2214 = vld [vmem:[%s2176 + $0x90] sm:$0xff]
                  %2215 = vst [vmem:[%s2177 + $0x90] sm:$0xff] %v2214
                  %v2216 = vld [vmem:[%s2176 + $0x98] sm:$0xff]
                  %2217 = vst [vmem:[%s2177 + $0x98] sm:$0xff] %v2216
                  %v2218 = vld [vmem:[%s2176 + $0xa0] sm:$0xff]
                  %2219 = vst [vmem:[%s2177 + $0xa0] sm:$0xff] %v2218
                  %v2220 = vld [vmem:[%s2176 + $0xa8] sm:$0xff]
                  %2221 = vst [vmem:[%s2177 + $0xa8] sm:$0xff] %v2220
                  %v2222 = vld [vmem:[%s2176 + $0xb0] sm:$0xff]
                  %2223 = vst [vmem:[%s2177 + $0xb0] sm:$0xff] %v2222
                  %v2224 = vld [vmem:[%s2176 + $0xb8] sm:$0xff]
                  %2225 = vst [vmem:[%s2177 + $0xb8] sm:$0xff] %v2224
                  %v2226 = vld [vmem:[%s2176 + $0xc0] sm:$0xff]
                  %2227 = vst [vmem:[%s2177 + $0xc0] sm:$0xff] %v2226
                  %v2228 = vld [vmem:[%s2176 + $0xc8] sm:$0xff]
                  %2229 = vst [vmem:[%s2177 + $0xc8] sm:$0xff] %v2228
                  %v2230 = vld [vmem:[%s2176 + $0xd0] sm:$0xff]
                  %2231 = vst [vmem:[%s2177 + $0xd0] sm:$0xff] %v2230
                  %v2232 = vld [vmem:[%s2176 + $0xd8] sm:$0xff]
                  %2233 = vst [vmem:[%s2177 + $0xd8] sm:$0xff] %v2232
                  %v2234 = vld [vmem:[%s2176 + $0xe0] sm:$0xff]
                  %2235 = vst [vmem:[%s2177 + $0xe0] sm:$0xff] %v2234
                  %v2236 = vld [vmem:[%s2176 + $0xe8] sm:$0xff]
                  %2237 = vst [vmem:[%s2177 + $0xe8] sm:$0xff] %v2236
                  %v2238 = vld [vmem:[%s2176 + $0xf0] sm:$0xff]
                  %2239 = vst [vmem:[%s2177 + $0xf0] sm:$0xff] %v2238
                  %v2240 = vld [vmem:[%s2176 + $0xf8] sm:$0xff]
                  %2241 = vst [vmem:[%s2177 + $0xf8] sm:$0xff] %v2240
                  %v2242 = vld [vmem:[%s2176 + $0x100] sm:$0xff]
                  %2243 = vst [vmem:[%s2177 + $0x100] sm:$0xff] %v2242
                  %v2244 = vld [vmem:[%s2176 + $0x108] sm:$0xff]
                  %2245 = vst [vmem:[%s2177 + $0x108] sm:$0xff] %v2244
                  %v2246 = vld [vmem:[%s2176 + $0x110] sm:$0xff]
                  %2247 = vst [vmem:[%s2177 + $0x110] sm:$0xff] %v2246
                  %v2248 = vld [vmem:[%s2176 + $0x118] sm:$0xff]
                  %2249 = vst [vmem:[%s2177 + $0x118] sm:$0xff] %v2248
                  %v2250 = vld [vmem:[%s2176 + $0x120] sm:$0xff]
                  %2251 = vst [vmem:[%s2177 + $0x120] sm:$0xff] %v2250
                  %v2252 = vld [vmem:[%s2176 + $0x128] sm:$0xff]
                  %2253 = vst [vmem:[%s2177 + $0x128] sm:$0xff] %v2252
                  %v2254 = vld [vmem:[%s2176 + $0x130] sm:$0xff]
                  %2255 = vst [vmem:[%s2177 + $0x130] sm:$0xff] %v2254
                  %v2256 = vld [vmem:[%s2176 + $0x138] sm:$0xff]
                  %2257 = vst [vmem:[%s2177 + $0x138] sm:$0xff] %v2256
                  %v2258 = vld [vmem:[%s2176 + $0x140] sm:$0xff]
                  %2259 = vst [vmem:[%s2177 + $0x140] sm:$0xff] %v2258
                  %v2260 = vld [vmem:[%s2176 + $0x148] sm:$0xff]
                  %2261 = vst [vmem:[%s2177 + $0x148] sm:$0xff] %v2260
                  %v2262 = vld [vmem:[%s2176 + $0x150] sm:$0xff]
                  %2263 = vst [vmem:[%s2177 + $0x150] sm:$0xff] %v2262
                  %v2264 = vld [vmem:[%s2176 + $0x158] sm:$0xff]
                  %2265 = vst [vmem:[%s2177 + $0x158] sm:$0xff] %v2264
                  %v2266 = vld [vmem:[%s2176 + $0x160] sm:$0xff]
                  %2267 = vst [vmem:[%s2177 + $0x160] sm:$0xff] %v2266
                  %v2268 = vld [vmem:[%s2176 + $0x168] sm:$0xff]
                  %2269 = vst [vmem:[%s2177 + $0x168] sm:$0xff] %v2268
                  %v2270 = vld [vmem:[%s2176 + $0x170] sm:$0xff]
                  %2271 = vst [vmem:[%s2177 + $0x170] sm:$0xff] %v2270
                  %v2272 = vld [vmem:[%s2176 + $0x178] sm:$0xff]
                  %2273 = vst [vmem:[%s2177 + $0x178] sm:$0xff] %v2272
                  %v2274 = vld [vmem:[%s2176 + $0x180] sm:$0xff]
                  %2275 = vst [vmem:[%s2177 + $0x180] sm:$0xff] %v2274
                  %v2276 = vld [vmem:[%s2176 + $0x188] sm:$0xff]
                  %2277 = vst [vmem:[%s2177 + $0x188] sm:$0xff] %v2276
                  %v2278 = vld [vmem:[%s2176 + $0x190] sm:$0xff]
                  %2279 = vst [vmem:[%s2177 + $0x190] sm:$0xff] %v2278
                  %v2280 = vld [vmem:[%s2176 + $0x198] sm:$0xff]
                  %2281 = vst [vmem:[%s2177 + $0x198] sm:$0xff] %v2280
                  %v2282 = vld [vmem:[%s2176 + $0x1a0] sm:$0xff]
                  %2283 = vst [vmem:[%s2177 + $0x1a0] sm:$0xff] %v2282
                  %v2284 = vld [vmem:[%s2176 + $0x1a8] sm:$0xff]
                  %2285 = vst [vmem:[%s2177 + $0x1a8] sm:$0xff] %v2284
                  %v2286 = vld [vmem:[%s2176 + $0x1b0] sm:$0xff]
                  %2287 = vst [vmem:[%s2177 + $0x1b0] sm:$0xff] %v2286
                  %v2288 = vld [vmem:[%s2176 + $0x1b8] sm:$0xff]
                  %2289 = vst [vmem:[%s2177 + $0x1b8] sm:$0xff] %v2288
                  %v2290 = vld [vmem:[%s2176 + $0x1c0] sm:$0xff]
                  %2291 = vst [vmem:[%s2177 + $0x1c0] sm:$0xff] %v2290
                  %v2292 = vld [vmem:[%s2176 + $0x1c8] sm:$0xff]
                  %2293 = vst [vmem:[%s2177 + $0x1c8] sm:$0xff] %v2292
                  %v2294 = vld [vmem:[%s2176 + $0x1d0] sm:$0xff]
                  %2295 = vst [vmem:[%s2177 + $0x1d0] sm:$0xff] %v2294
                  %v2296 = vld [vmem:[%s2176 + $0x1d8] sm:$0xff]
                  %2297 = vst [vmem:[%s2177 + $0x1d8] sm:$0xff] %v2296
                  %v2298 = vld [vmem:[%s2176 + $0x1e0] sm:$0xff]
                  %2299 = vst [vmem:[%s2177 + $0x1e0] sm:$0xff] %v2298
                  %v2300 = vld [vmem:[%s2176 + $0x1e8] sm:$0xff]
                  %2301 = vst [vmem:[%s2177 + $0x1e8] sm:$0xff] %v2300
                  %v2302 = vld [vmem:[%s2176 + $0x1f0] sm:$0xff]
                  %2303 = vst [vmem:[%s2177 + $0x1f0] sm:$0xff] %v2302
                  %v2304 = vld [vmem:[%s2176 + $0x1f8] sm:$0xff]
                  %2305 = vst [vmem:[%s2177 + $0x1f8] sm:$0xff] %v2304
                  %s2306 = sadd.s32 1, %s2175
                  %p2307 = scmp.ge.s32.totalorder %s2306, %s2168
                  %s2308 = scalar_select %p2307, 0, %s2306
                  %s2309 = smul.u32 %s2308, 512
                  %s2310 = smul.u32 %s2308, 512
                  %s2311 = scalar_lea.vmem %s1976, %s2309 [#allocation6]
                  %s2312 = scalar_lea.vmem %s1987, %s2310
                $region79: #{tpu_custom_call.1} parent=73 // loop_footer
                  %s2172 = sadd.s32 %s2170, 1
                $region80: #{tpu_custom_call.1} parent=73 // loop_footer_branch
                  %2169 = sbr.rel target = $region76
                $region81: #{tpu_custom_call.1} parent=73 // loop_exit
                  _
                %s2313 = sshrl.u32 %s1983, 6
                %s2314 = sand.u32 %s1983, 63
                %s2315 = smul.u32 %s2313, 64
                %s2316 = smul.u32 8, %s2315
                %s2317 = scalar_lea.vmem %s1976, %s2316 [#allocation6]
                %s2318 = smul.u32 8, %s2315
                %s2319 = scalar_lea.vmem %s1987, %s2318
                // While loop
                $region82: #{tpu_custom_call.1} parent=73 // loop_pre_header
                  _
                $region83: #{tpu_custom_call.1} parent=73 // loop_header
                  %s2321 = sphi 0, %s2323
                  %p2322 = scmp.ge.s32.totalorder %s2321, %s2314
                  %s2326 = sphi 0, %s2333
                  %s2327 = sphi %s2317, %s2336
                  %s2328 = sphi %s2319, %s2337
                $region84: #{tpu_custom_call.1} parent=73 // loop_header_branch
                  %2325 = sbr.rel (%p2322) target = $region88
                $region85: #{tpu_custom_call.1} parent=73 // loop_body
                  %v2329 = vld [vmem:[%s2327] sm:$0xff]
                  %2330 = vst [vmem:[%s2328] sm:$0xff] %v2329
                  %s2331 = sadd.s32 1, %s2326
                  %p2332 = scmp.ge.s32.totalorder %s2331, %s2314
                  %s2333 = scalar_select %p2332, 0, %s2331
                  %s2334 = smul.u32 %s2333, 8
                  %s2335 = smul.u32 %s2333, 8
                  %s2336 = scalar_lea.vmem %s2317, %s2334 [#allocation6]
                  %s2337 = scalar_lea.vmem %s2319, %s2335
                $region86: #{tpu_custom_call.1} parent=73 // loop_footer
                  %s2323 = sadd.s32 %s2321, 1
                $region87: #{tpu_custom_call.1} parent=73 // loop_footer_branch
                  %2320 = sbr.rel target = $region83
                $region88: #{tpu_custom_call.1} parent=73 // loop_exit
                  _
              $region74: #{tpu_custom_call.1} parent=51 // pred_fallthru
                _
              // Predicated region
              $region89: #{tpu_custom_call.1} parent=51 // pred_check
                _
              $region90: #{tpu_custom_call.1} parent=51 // pred_check_branch
                %2339 = sbr.rel target = $region92
              $region91: #{tpu_custom_call.1} parent=51 // pred_region
                _
              $region92: #{tpu_custom_call.1} parent=51 // pred_fallthru
                _
            $region52: #{tpu_custom_call.1} parent=47 // pred_fallthru
              _
            // Predicated region
            $region53: #{tpu_custom_call.1} parent=47 // pred_check
              _
            $region54: #{tpu_custom_call.1} parent=47 // pred_check_branch
              %1994 = sbr.rel target = $region56
            $region55: #{tpu_custom_call.1} parent=47 // pred_region
              %s1996 = sshrl.u32 %s1983, 6
              // While loop
              $region57: #{tpu_custom_call.1} parent=55 // loop_pre_header
                _
              $region58: #{tpu_custom_call.1} parent=55 // loop_header
                %s1998 = sphi 0, %s2000
                %p1999 = scmp.ge.s32.totalorder %s1998, %s1996
                %s2003 = sphi 0, %s2136
                %s2004 = sphi %s1976, %s2139
                %s2005 = sphi %s1987, %s2140
              $region59: #{tpu_custom_call.1} parent=55 // loop_header_branch
                %2002 = sbr.rel (%p1999) target = $region63
              $region60: #{tpu_custom_call.1} parent=55 // loop_body
                %v2006 = vld [vmem:[%s2004] sm:$0xff]
                %2007 = vst [vmem:[%s2005] sm:$0xff] %v2006
                %v2008 = vld [vmem:[%s2004 + $0x8] sm:$0xff]
                %2009 = vst [vmem:[%s2005 + $0x8] sm:$0xff] %v2008
                %v2010 = vld [vmem:[%s2004 + $0x10] sm:$0xff]
                %2011 = vst [vmem:[%s2005 + $0x10] sm:$0xff] %v2010
                %v2012 = vld [vmem:[%s2004 + $0x18] sm:$0xff]
                %2013 = vst [vmem:[%s2005 + $0x18] sm:$0xff] %v2012
                %v2014 = vld [vmem:[%s2004 + $0x20] sm:$0xff]
                %2015 = vst [vmem:[%s2005 + $0x20] sm:$0xff] %v2014
                %v2016 = vld [vmem:[%s2004 + $0x28] sm:$0xff]
                %2017 = vst [vmem:[%s2005 + $0x28] sm:$0xff] %v2016
                %v2018 = vld [vmem:[%s2004 + $0x30] sm:$0xff]
                %2019 = vst [vmem:[%s2005 + $0x30] sm:$0xff] %v2018
                %v2020 = vld [vmem:[%s2004 + $0x38] sm:$0xff]
                %2021 = vst [vmem:[%s2005 + $0x38] sm:$0xff] %v2020
                %v2022 = vld [vmem:[%s2004 + $0x40] sm:$0xff]
                %2023 = vst [vmem:[%s2005 + $0x40] sm:$0xff] %v2022
                %v2024 = vld [vmem:[%s2004 + $0x48] sm:$0xff]
                %2025 = vst [vmem:[%s2005 + $0x48] sm:$0xff] %v2024
                %v2026 = vld [vmem:[%s2004 + $0x50] sm:$0xff]
                %2027 = vst [vmem:[%s2005 + $0x50] sm:$0xff] %v2026
                %v2028 = vld [vmem:[%s2004 + $0x58] sm:$0xff]
                %2029 = vst [vmem:[%s2005 + $0x58] sm:$0xff] %v2028
                %v2030 = vld [vmem:[%s2004 + $0x60] sm:$0xff]
                %2031 = vst [vmem:[%s2005 + $0x60] sm:$0xff] %v2030
                %v2032 = vld [vmem:[%s2004 + $0x68] sm:$0xff]
                %2033 = vst [vmem:[%s2005 + $0x68] sm:$0xff] %v2032
                %v2034 = vld [vmem:[%s2004 + $0x70] sm:$0xff]
                %2035 = vst [vmem:[%s2005 + $0x70] sm:$0xff] %v2034
                %v2036 = vld [vmem:[%s2004 + $0x78] sm:$0xff]
                %2037 = vst [vmem:[%s2005 + $0x78] sm:$0xff] %v2036
                %v2038 = vld [vmem:[%s2004 + $0x80] sm:$0xff]
                %2039 = vst [vmem:[%s2005 + $0x80] sm:$0xff] %v2038
                %v2040 = vld [vmem:[%s2004 + $0x88] sm:$0xff]
                %2041 = vst [vmem:[%s2005 + $0x88] sm:$0xff] %v2040
                %v2042 = vld [vmem:[%s2004 + $0x90] sm:$0xff]
                %2043 = vst [vmem:[%s2005 + $0x90] sm:$0xff] %v2042
                %v2044 = vld [vmem:[%s2004 + $0x98] sm:$0xff]
                %2045 = vst [vmem:[%s2005 + $0x98] sm:$0xff] %v2044
                %v2046 = vld [vmem:[%s2004 + $0xa0] sm:$0xff]
                %2047 = vst [vmem:[%s2005 + $0xa0] sm:$0xff] %v2046
                %v2048 = vld [vmem:[%s2004 + $0xa8] sm:$0xff]
                %2049 = vst [vmem:[%s2005 + $0xa8] sm:$0xff] %v2048
                %v2050 = vld [vmem:[%s2004 + $0xb0] sm:$0xff]
                %2051 = vst [vmem:[%s2005 + $0xb0] sm:$0xff] %v2050
                %v2052 = vld [vmem:[%s2004 + $0xb8] sm:$0xff]
                %2053 = vst [vmem:[%s2005 + $0xb8] sm:$0xff] %v2052
                %v2054 = vld [vmem:[%s2004 + $0xc0] sm:$0xff]
                %2055 = vst [vmem:[%s2005 + $0xc0] sm:$0xff] %v2054
                %v2056 = vld [vmem:[%s2004 + $0xc8] sm:$0xff]
                %2057 = vst [vmem:[%s2005 + $0xc8] sm:$0xff] %v2056
                %v2058 = vld [vmem:[%s2004 + $0xd0] sm:$0xff]
                %2059 = vst [vmem:[%s2005 + $0xd0] sm:$0xff] %v2058
                %v2060 = vld [vmem:[%s2004 + $0xd8] sm:$0xff]
                %2061 = vst [vmem:[%s2005 + $0xd8] sm:$0xff] %v2060
                %v2062 = vld [vmem:[%s2004 + $0xe0] sm:$0xff]
                %2063 = vst [vmem:[%s2005 + $0xe0] sm:$0xff] %v2062
                %v2064 = vld [vmem:[%s2004 + $0xe8] sm:$0xff]
                %2065 = vst [vmem:[%s2005 + $0xe8] sm:$0xff] %v2064
                %v2066 = vld [vmem:[%s2004 + $0xf0] sm:$0xff]
                %2067 = vst [vmem:[%s2005 + $0xf0] sm:$0xff] %v2066
                %v2068 = vld [vmem:[%s2004 + $0xf8] sm:$0xff]
                %2069 = vst [vmem:[%s2005 + $0xf8] sm:$0xff] %v2068
                %v2070 = vld [vmem:[%s2004 + $0x100] sm:$0xff]
                %2071 = vst [vmem:[%s2005 + $0x100] sm:$0xff] %v2070
                %v2072 = vld [vmem:[%s2004 + $0x108] sm:$0xff]
                %2073 = vst [vmem:[%s2005 + $0x108] sm:$0xff] %v2072
                %v2074 = vld [vmem:[%s2004 + $0x110] sm:$0xff]
                %2075 = vst [vmem:[%s2005 + $0x110] sm:$0xff] %v2074
                %v2076 = vld [vmem:[%s2004 + $0x118] sm:$0xff]
                %2077 = vst [vmem:[%s2005 + $0x118] sm:$0xff] %v2076
                %v2078 = vld [vmem:[%s2004 + $0x120] sm:$0xff]
                %2079 = vst [vmem:[%s2005 + $0x120] sm:$0xff] %v2078
                %v2080 = vld [vmem:[%s2004 + $0x128] sm:$0xff]
                %2081 = vst [vmem:[%s2005 + $0x128] sm:$0xff] %v2080
                %v2082 = vld [vmem:[%s2004 + $0x130] sm:$0xff]
                %2083 = vst [vmem:[%s2005 + $0x130] sm:$0xff] %v2082
                %v2084 = vld [vmem:[%s2004 + $0x138] sm:$0xff]
                %2085 = vst [vmem:[%s2005 + $0x138] sm:$0xff] %v2084
                %v2086 = vld [vmem:[%s2004 + $0x140] sm:$0xff]
                %2087 = vst [vmem:[%s2005 + $0x140] sm:$0xff] %v2086
                %v2088 = vld [vmem:[%s2004 + $0x148] sm:$0xff]
                %2089 = vst [vmem:[%s2005 + $0x148] sm:$0xff] %v2088
                %v2090 = vld [vmem:[%s2004 + $0x150] sm:$0xff]
                %2091 = vst [vmem:[%s2005 + $0x150] sm:$0xff] %v2090
                %v2092 = vld [vmem:[%s2004 + $0x158] sm:$0xff]
                %2093 = vst [vmem:[%s2005 + $0x158] sm:$0xff] %v2092
                %v2094 = vld [vmem:[%s2004 + $0x160] sm:$0xff]
                %2095 = vst [vmem:[%s2005 + $0x160] sm:$0xff] %v2094
                %v2096 = vld [vmem:[%s2004 + $0x168] sm:$0xff]
                %2097 = vst [vmem:[%s2005 + $0x168] sm:$0xff] %v2096
                %v2098 = vld [vmem:[%s2004 + $0x170] sm:$0xff]
                %2099 = vst [vmem:[%s2005 + $0x170] sm:$0xff] %v2098
                %v2100 = vld [vmem:[%s2004 + $0x178] sm:$0xff]
                %2101 = vst [vmem:[%s2005 + $0x178] sm:$0xff] %v2100
                %v2102 = vld [vmem:[%s2004 + $0x180] sm:$0xff]
                %2103 = vst [vmem:[%s2005 + $0x180] sm:$0xff] %v2102
                %v2104 = vld [vmem:[%s2004 + $0x188] sm:$0xff]
                %2105 = vst [vmem:[%s2005 + $0x188] sm:$0xff] %v2104
                %v2106 = vld [vmem:[%s2004 + $0x190] sm:$0xff]
                %2107 = vst [vmem:[%s2005 + $0x190] sm:$0xff] %v2106
                %v2108 = vld [vmem:[%s2004 + $0x198] sm:$0xff]
                %2109 = vst [vmem:[%s2005 + $0x198] sm:$0xff] %v2108
                %v2110 = vld [vmem:[%s2004 + $0x1a0] sm:$0xff]
                %2111 = vst [vmem:[%s2005 + $0x1a0] sm:$0xff] %v2110
                %v2112 = vld [vmem:[%s2004 + $0x1a8] sm:$0xff]
                %2113 = vst [vmem:[%s2005 + $0x1a8] sm:$0xff] %v2112
                %v2114 = vld [vmem:[%s2004 + $0x1b0] sm:$0xff]
                %2115 = vst [vmem:[%s2005 + $0x1b0] sm:$0xff] %v2114
                %v2116 = vld [vmem:[%s2004 + $0x1b8] sm:$0xff]
                %2117 = vst [vmem:[%s2005 + $0x1b8] sm:$0xff] %v2116
                %v2118 = vld [vmem:[%s2004 + $0x1c0] sm:$0xff]
                %2119 = vst [vmem:[%s2005 + $0x1c0] sm:$0xff] %v2118
                %v2120 = vld [vmem:[%s2004 + $0x1c8] sm:$0xff]
                %2121 = vst [vmem:[%s2005 + $0x1c8] sm:$0xff] %v2120
                %v2122 = vld [vmem:[%s2004 + $0x1d0] sm:$0xff]
                %2123 = vst [vmem:[%s2005 + $0x1d0] sm:$0xff] %v2122
                %v2124 = vld [vmem:[%s2004 + $0x1d8] sm:$0xff]
                %2125 = vst [vmem:[%s2005 + $0x1d8] sm:$0xff] %v2124
                %v2126 = vld [vmem:[%s2004 + $0x1e0] sm:$0xff]
                %2127 = vst [vmem:[%s2005 + $0x1e0] sm:$0xff] %v2126
                %v2128 = vld [vmem:[%s2004 + $0x1e8] sm:$0xff]
                %2129 = vst [vmem:[%s2005 + $0x1e8] sm:$0xff] %v2128
                %v2130 = vld [vmem:[%s2004 + $0x1f0] sm:$0xff]
                %2131 = vst [vmem:[%s2005 + $0x1f0] sm:$0xff] %v2130
                %v2132 = vld [vmem:[%s2004 + $0x1f8] sm:$0xff]
                %2133 = vst [vmem:[%s2005 + $0x1f8] sm:$0xff] %v2132
                %s2134 = sadd.s32 1, %s2003
                %p2135 = scmp.ge.s32.totalorder %s2134, %s1996
                %s2136 = scalar_select %p2135, 0, %s2134
                %s2137 = smul.u32 %s2136, 512
                %s2138 = smul.u32 %s2136, 512
                %s2139 = scalar_lea.vmem %s1976, %s2137 [#allocation6]
                %s2140 = scalar_lea.vmem %s1987, %s2138
              $region61: #{tpu_custom_call.1} parent=55 // loop_footer
                %s2000 = sadd.s32 %s1998, 1
              $region62: #{tpu_custom_call.1} parent=55 // loop_footer_branch
                %1997 = sbr.rel target = $region58
              $region63: #{tpu_custom_call.1} parent=55 // loop_exit
                _
              %s2141 = sshrl.u32 %s1983, 6
              %s2142 = sand.u32 %s1983, 63
              %s2143 = smul.u32 %s2141, 64
              %s2144 = smul.u32 8, %s2143
              %s2145 = scalar_lea.vmem %s1976, %s2144 [#allocation6]
              %s2146 = smul.u32 8, %s2143
              %s2147 = scalar_lea.vmem %s1987, %s2146
              // While loop
              $region64: #{tpu_custom_call.1} parent=55 // loop_pre_header
                _
              $region65: #{tpu_custom_call.1} parent=55 // loop_header
                %s2149 = sphi 0, %s2151
                %p2150 = scmp.ge.s32.totalorder %s2149, %s2142
                %s2154 = sphi 0, %s2161
                %s2155 = sphi %s2145, %s2164
                %s2156 = sphi %s2147, %s2165
              $region66: #{tpu_custom_call.1} parent=55 // loop_header_branch
                %2153 = sbr.rel (%p2150) target = $region70
              $region67: #{tpu_custom_call.1} parent=55 // loop_body
                %v2157 = vld [vmem:[%s2155] sm:$0xff]
                %2158 = vst [vmem:[%s2156] sm:$0xff] %v2157
                %s2159 = sadd.s32 1, %s2154
                %p2160 = scmp.ge.s32.totalorder %s2159, %s2142
                %s2161 = scalar_select %p2160, 0, %s2159
                %s2162 = smul.u32 %s2161, 8
                %s2163 = smul.u32 %s2161, 8
                %s2164 = scalar_lea.vmem %s2145, %s2162 [#allocation6]
                %s2165 = scalar_lea.vmem %s2147, %s2163
              $region68: #{tpu_custom_call.1} parent=55 // loop_footer
                %s2151 = sadd.s32 %s2149, 1
              $region69: #{tpu_custom_call.1} parent=55 // loop_footer_branch
                %2148 = sbr.rel target = $region65
              $region70: #{tpu_custom_call.1} parent=55 // loop_exit
                _
            $region56: #{tpu_custom_call.1} parent=47 // pred_fallthru
              _
          $region48: #{tpu_custom_call.1} parent=43 // pred_fallthru
            _
          %2340 = vnop
        $region44: #{tpu_custom_call.1} parent=31 // pred_fallthru
          _
      $region32: #{tpu_custom_call.1} parent=5 // pred_fallthru
        _
      %p2341 = scmp.le.s32.totalorder 2, %s11
      // Predicated region
      $region93: #{tpu_custom_call.1} parent=5 // pred_check
        %p2342 = pneg %p2341
      $region94: #{tpu_custom_call.1} parent=5 // pred_check_branch
        %2344 = sbr.rel (%p2342) target = $region96
      $region95: #{tpu_custom_call.1} parent=5 // pred_region
        %s2345 = ssub.s32 %s11, 2
        // Predicated region
        $region97: #{tpu_custom_call.1} parent=95 // pred_check
          %p2346 = pneg %p108
        $region98: #{tpu_custom_call.1} parent=95 // pred_check_branch
          %2348 = sbr.rel (%p2346) target = $region100
        $region99: #{tpu_custom_call.1} parent=95 // pred_region
          %s2349 = sand.u32 %s93, 1
          %s2350 = sand.u32 %s93, 1
          %s2351 = smul.addr %s2350, 1280
          %s2352 = scalar_lea.vmem [#allocation6], %s2351
        $region100: #{tpu_custom_call.1} parent=95 // pred_fallthru
          _
      $region96: #{tpu_custom_call.1} parent=5 // pred_fallthru
        _
    $region6: #{tpu_custom_call.1} parent=1 // loop_footer
      %s15 = sadd.s32 1, %s11
    $region7: #{tpu_custom_call.1} parent=1 // loop_footer_branch
      %10 = sbr.rel target = $region3
    $region8: #{tpu_custom_call.1} parent=1 // loop_exit
      _
    %2353 = vsyncpa [#allocation3], 1
    %s2354 = scalar_lea.sflag [#allocation3], 1
    %2355 = vsyncpa %s2354, 1
    %2356 = vsyncpa [#allocation5], 1

</llo_original>
